<compile_context>
chip_gen: v6e
topology: v6e:2x2x1
jax: 0.10.0
libtpu: 0.0.40
codegen_flags: <defaults>
</compile_context>

<pallas_src>
import functools
import math

import jax
import jax.numpy as jnp
from jax.experimental import pallas as pl
from jax.experimental.pallas import tpu as pltpu

# ----------------------- config (small, self-consistent) -----------------------
BATCH = 2
SEQ = 8
HIDDEN = 32
NUM_HEADS = 4
HEAD_DIM = HIDDEN // NUM_HEADS
INTERMEDIATE = 64
NUM_LAYERS = 2
LN_EPS = 1e-12


# --------------------------------- kernel --------------------------------------
def _layer_norm(x, gamma, beta):
    mean = jnp.mean(x, axis=-1, keepdims=True)
    var = jnp.mean((x - mean) * (x - mean), axis=-1, keepdims=True)
    inv = jax.lax.rsqrt(var + LN_EPS)
    return (x - mean) * inv * gamma + beta


def _gelu(x):
    c = math.sqrt(2.0 / math.pi)
    return 0.5 * x * (1.0 + jnp.tanh(c * (x + 0.044715 * x * x * x)))


def bert_encoder_kernel(
    h_ref, bias_ref,
    wqkv_ref, bqkv_ref,
    wo_ref, bo_ref, ln1g_ref, ln1b_ref,
    wi_ref, bi_ref, w2_ref, b2_ref, ln2g_ref, ln2b_ref,
    out_ref,
    *, num_heads, head_dim,
):
    layer = pl.program_id(1)                          # inner ("arbitrary") axis
    H = num_heads * head_dim
    S = h_ref.shape[0]

    # Layer 0 for this batch element: seed the VMEM-resident running state.
    @pl.when(layer == 0)
    def _init():
        out_ref[...] = h_ref[...]

    h = out_ref[...].astype(jnp.float32)              # (S, H), stays in VMEM

    # --- BertSelfAttention: fused QKV projection (1/sqrt(Dh) folded into Q) ---
    qkv = jnp.dot(h, wqkv_ref[...], preferred_element_type=jnp.float32) + bqkv_ref[...]

    def heads(x):                                      # (S, H) -> (NH, S, Dh)
        return jnp.swapaxes(x.reshape(S, num_heads, head_dim), 0, 1)

    q = heads(qkv[:, :H])
    k = heads(qkv[:, H:2 * H])
    v = heads(qkv[:, 2 * H:])

    scores = jnp.einsum('hqd,hkd->hqk', q, k,
                        preferred_element_type=jnp.float32)        # (NH, S, S)
    scores = scores + bias_ref[...]                    # (NB, S, S) bcast over heads
    scores = scores - jnp.max(scores, axis=-1, keepdims=True)
    probs = jnp.exp(scores)
    probs = probs / jnp.sum(probs, axis=-1, keepdims=True)   # exact normalization
    # dropout(attention_probs) is identity in eval mode
    ctx = jnp.einsum('hqk,hkd->hqd', probs, v,
                     preferred_element_type=jnp.float32)           # (NH, S, Dh)
    ctx = jnp.swapaxes(ctx, 0, 1).reshape(S, H)                    # (S, H)

    # --- BertSelfOutput: dense + dropout(identity) + LayerNorm(residual) ---
    attn = jnp.dot(ctx, wo_ref[...], preferred_element_type=jnp.float32) + bo_ref[...]
    attn = _layer_norm(attn + h, ln1g_ref[...], ln1b_ref[...])

    # --- BertIntermediate: dense + gelu ---
    inter = jnp.dot(attn, wi_ref[...], preferred_element_type=jnp.float32) + bi_ref[...]
    inter = _gelu(inter)

    # --- BertOutput: dense + dropout(identity) + LayerNorm(residual) ---
    out = jnp.dot(inter, w2_ref[...], preferred_element_type=jnp.float32) + b2_ref[...]
    out = _layer_norm(out + attn, ln2g_ref[...], ln2b_ref[...])

    out_ref[...] = out.astype(out_ref.dtype)           # resident across layer axis


# --------------------------------- wrapper --------------------------------------
def _pack_params(params):
    """Stack per-layer params along a leading L axis; fuse QKV; fold attn scale."""
    scale = 1.0 / math.sqrt(HEAD_DIM)
    acc = {k: [] for k in ("wqkv", "bqkv", "wo", "bo", "ln1g", "ln1b",
                           "wi", "bi", "w2", "b2", "ln2g", "ln2b")}
    for (wq, bq, wk, bk, wv, bv, wo, bo, ln1g, ln1b,
         wi, bi, w2, b2, ln2g, ln2b) in params:
        acc["wqkv"].append(jnp.concatenate([wq * scale, wk, wv], axis=1))   # (H, 3H)
        acc["bqkv"].append(jnp.concatenate([bq * scale, bk, bv], axis=0))   # (3H,)
        acc["wo"].append(wo); acc["bo"].append(bo)
        acc["ln1g"].append(ln1g); acc["ln1b"].append(ln1b)
        acc["wi"].append(wi); acc["bi"].append(bi)
        acc["w2"].append(w2); acc["b2"].append(b2)
        acc["ln2g"].append(ln2g); acc["ln2b"].append(ln2b)

    def stack(name, is_vec):
        a = jnp.stack(acc[name], axis=0)
        return a[:, None, :] if is_vec else a           # vectors -> (L, 1, N)

    order = [("wqkv", False), ("bqkv", True), ("wo", False), ("bo", True),
             ("ln1g", True), ("ln1b", True), ("wi", False), ("bi", True),
             ("w2", False), ("b2", True), ("ln2g", True), ("ln2b", True)]
    return [stack(n, v) for n, v in order]


def _build_attn_bias(attention_mask, rel_pos, B, S):
    """Per-batch additive bias (B, NB, S, S); NB is 1 or NUM_HEADS."""
    bias = jnp.zeros((B, 1, S, S), jnp.float32)
    if attention_mask is not None:
        bias = bias + attention_mask.astype(jnp.float32)
    if rel_pos is not None:
        bias = bias + rel_pos.astype(jnp.float32)
    return bias


def bert_encoder_pallas(hidden, attention_mask=None, params=None, rel_pos=None):
    """BertEncoder.forward (output_attentions=False, output_hidden_states=False)."""
    B, S, H = hidden.shape
    L = len(params)

    packed = _pack_params(params)
    bias = _build_attn_bias(attention_mask, rel_pos, B, S)
    NB = bias.shape[1]

    hid_spec = pl.BlockSpec((None, S, H), lambda b, l: (b, 0, 0))
    bias_spec = pl.BlockSpec((None, NB, S, S), lambda b, l: (b, 0, 0, 0))

    def layer_spec(arr):
        nrest = arr.ndim - 1
        return pl.BlockSpec((None,) + arr.shape[1:],
                            lambda b, l: (l,) + (0,) * nrest)

    in_specs = [hid_spec, bias_spec] + [layer_spec(a) for a in packed]

    out = pl.pallas_call(
        functools.partial(bert_encoder_kernel,
                          num_heads=NUM_HEADS, head_dim=HEAD_DIM),
        out_shape=jax.ShapeDtypeStruct((B, S, H), hidden.dtype),
        grid=(B, L),                      # batch parallel (v7x megacore), layers serial
        in_specs=in_specs,
        out_specs=pl.BlockSpec((None, S, H), lambda b, l: (b, 0, 0)),
        compiler_params=pltpu.CompilerParams(
            dimension_semantics=("parallel", "arbitrary"),
            # Raised above v5e/v6e scoped defaults; production shapes on v7x need
            # bf16 / intermediate-dim tiling instead (64 MiB physical VMEM).
            vmem_limit_bytes=64 * 1024 * 1024,
        ),
    )(hidden, bias, *packed)

    return (out,)


# ------------------------ deterministic parameter init --------------------------
def init_params(key):
    params = []
    for _ in range(NUM_LAYERS):
        keys = jax.random.split(key, 8)
        key = keys[-1]
        scale = 0.02
        wq = scale * jax.random.normal(keys[0], (HIDDEN, HIDDEN), jnp.float32)
        wk = scale * jax.random.normal(keys[1], (HIDDEN, HIDDEN), jnp.float32)
        wv = scale * jax.random.normal(keys[2], (HIDDEN, HIDDEN), jnp.float32)
        wo = scale * jax.random.normal(keys[3], (HIDDEN, HIDDEN), jnp.float32)
        wi = scale * jax.random.normal(keys[4], (HIDDEN, INTERMEDIATE), jnp.float32)
        w2 = scale * jax.random.normal(keys[5], (INTERMEDIATE, HIDDEN), jnp.float32)
        bq = jnp.zeros((HIDDEN,), jnp.float32)
        bk = jnp.zeros((HIDDEN,), jnp.float32)
        bv = jnp.zeros((HIDDEN,), jnp.float32)
        bo = 0.01 * jax.random.normal(keys[6], (HIDDEN,), jnp.float32)
        bi = jnp.zeros((INTERMEDIATE,), jnp.float32)
        b2 = jnp.zeros((HIDDEN,), jnp.float32)
        ln1g = jnp.ones((HIDDEN,), jnp.float32)
        ln1b = jnp.zeros((HIDDEN,), jnp.float32)
        ln2g = jnp.ones((HIDDEN,), jnp.float32)
        ln2b = jnp.zeros((HIDDEN,), jnp.float32)
        params.append((wq, bq, wk, bk, wv, bv, wo, bo, ln1g, ln1b,
                       wi, bi, w2, b2, ln2g, ln2b))
    return params


# ------------------------------ pure-JAX reference -------------------------------
def bert_encoder_ref(hidden, attention_mask, params, rel_pos=None):
    B, S, H = hidden.shape
    bias = jnp.zeros((B, NUM_HEADS, S, S), jnp.float32)
    if attention_mask is not None:
        bias = bias + attention_mask
    if rel_pos is not None:
        bias = bias + rel_pos
    for (wq, bq, wk, bk, wv, bv, wo, bo, ln1g, ln1b,
         wi, bi, w2, b2, ln2g, ln2b) in params:
        q = hidden @ wq + bq
        k = hidden @ wk + bk
        v = hidden @ wv + bv

        def split_heads(x):
            return x.reshape(B, S, NUM_HEADS, HEAD_DIM).transpose(0, 2, 1, 3)

        qh, kh, vh = split_heads(q), split_heads(k), split_heads(v)
        scores = jnp.einsum('bhqd,bhkd->bhqk', qh, kh) / math.sqrt(HEAD_DIM)
        scores = scores + bias
        probs = jax.nn.softmax(scores, axis=-1)
        ctx = jnp.einsum('bhqk,bhkd->bhqd', probs, vh)
        ctx = ctx.transpose(0, 2, 1, 3).reshape(B, S, H)
        attn_out = ctx @ wo + bo
        x = attn_out + hidden
        mean = x.mean(-1, keepdims=True)
        var = ((x - mean) ** 2).mean(-1, keepdims=True)
        attn_out = (x - mean) / jnp.sqrt(var + LN_EPS) * ln1g + ln1b
        inter = attn_out @ wi + bi
        c = math.sqrt(2.0 / math.pi)
        inter = 0.5 * inter * (1.0 + jnp.tanh(c * (inter + 0.044715 * inter ** 3)))
        out = inter @ w2 + b2
        x = out + attn_out
        mean = x.mean(-1, keepdims=True)
        var = ((x - mean) ** 2).mean(-1, keepdims=True)
        hidden = (x - mean) / jnp.sqrt(var + LN_EPS) * ln2g + ln2b
    return (hidden,)


# ------------------------------------ main ---------------------------------------
if __name__ == "__main__":
    key = jax.random.PRNGKey(0)
    k_x, k_p = jax.random.split(key)

    hidden_states = jax.random.normal(k_x, (BATCH, SEQ, HIDDEN), jnp.float32)

    # standard BERT-style additive mask: 0 for attend, -10000 for padded positions
    lengths = jnp.array([SEQ, SEQ - 2])
    valid = (jnp.arange(SEQ)[None, :] < lengths[:, None]).astype(jnp.float32)
    attention_mask = (1.0 - valid)[:, None, None, :] * -10000.0   # (B, 1, 1, S)
    attention_mask = jnp.broadcast_to(attention_mask, (BATCH, 1, SEQ, SEQ))

    params = init_params(k_p)

    out = bert_encoder_pallas(hidden_states, attention_mask, params)[0]
    out = jax.block_until_ready(out)

    ref = bert_encoder_ref(hidden_states, attention_mask, params)[0]
    assert out.shape == (BATCH, SEQ, HIDDEN)
    assert jnp.allclose(out, ref, atol=2e-3, rtol=2e-3), "mismatch vs reference"

    print("KERNEL_OK")
</pallas_src>

<mosaic_0001>
module attributes {stable_mosaic.version = 11 : i64} {
  func.func @bert_encoder_kernel(%arg0: i32, %arg1: i32, %arg2: memref<1x8x32xf32, #tpu.memory_space<vmem>>, %arg3: memref<1x1x8x8xf32, #tpu.memory_space<vmem>>, %arg4: memref<1x32x96xf32, #tpu.memory_space<vmem>>, %arg5: memref<1x1x96xf32, #tpu.memory_space<vmem>>, %arg6: memref<1x32x32xf32, #tpu.memory_space<vmem>>, %arg7: memref<1x1x32xf32, #tpu.memory_space<vmem>>, %arg8: memref<1x1x32xf32, #tpu.memory_space<vmem>>, %arg9: memref<1x1x32xf32, #tpu.memory_space<vmem>>, %arg10: memref<1x32x64xf32, #tpu.memory_space<vmem>>, %arg11: memref<1x1x64xf32, #tpu.memory_space<vmem>>, %arg12: memref<1x64x32xf32, #tpu.memory_space<vmem>>, %arg13: memref<1x1x32xf32, #tpu.memory_space<vmem>>, %arg14: memref<1x1x32xf32, #tpu.memory_space<vmem>>, %arg15: memref<1x1x32xf32, #tpu.memory_space<vmem>>, %arg16: memref<1x8x32xf32, #tpu.memory_space<vmem>>) attributes {dimension_semantics = [#tpu.dimension_semantics<parallel>, #tpu.dimension_semantics<arbitrary>], iteration_bounds = array<i64: 2, 2>, scalar_prefetch = 0 : i64, scratch_operands = 0 : i64, tpu.core_type = #tpu.core_type<tc>, window_params = [{transform_indices = @transform_0, window_bounds = array<i64: 1, 8, 32>}, {transform_indices = @transform_1, window_bounds = array<i64: 1, 1, 8, 8>}, {transform_indices = @transform_2, window_bounds = array<i64: 1, 32, 96>}, {transform_indices = @transform_3, window_bounds = array<i64: 1, 1, 96>}, {transform_indices = @transform_4, window_bounds = array<i64: 1, 32, 32>}, {transform_indices = @transform_5, window_bounds = array<i64: 1, 1, 32>}, {transform_indices = @transform_6, window_bounds = array<i64: 1, 1, 32>}, {transform_indices = @transform_7, window_bounds = array<i64: 1, 1, 32>}, {transform_indices = @transform_8, window_bounds = array<i64: 1, 32, 64>}, {transform_indices = @transform_9, window_bounds = array<i64: 1, 1, 64>}, {transform_indices = @transform_10, window_bounds = array<i64: 1, 64, 32>}, {transform_indices = @transform_11, window_bounds = array<i64: 1, 1, 32>}, {transform_indices = @transform_12, window_bounds = array<i64: 1, 1, 32>}, {transform_indices = @transform_13, window_bounds = array<i64: 1, 1, 32>}, {transform_indices = @transform_14, window_bounds = array<i64: 1, 8, 32>}]} {
    %c0_i32 = arith.constant 0 : i32
    %0 = arith.cmpi eq, %arg1, %c0_i32 : i32
    %1 = arith.extui %0 : i1 to i32
    %c0_i32_0 = arith.constant 0 : i32
    %2 = arith.cmpi ne, %1, %c0_i32_0 : i32
    scf.if %2 {
      %c0_67 = arith.constant 0 : index
      %c0_68 = arith.constant 0 : index
      %c0_69 = arith.constant 0 : index
      %133 = vector.load %arg2[%c0_67, %c0_68, %c0_69] : memref<1x8x32xf32, #tpu.memory_space<vmem>>, vector<1x8x32xf32>
      %134 = vector.shape_cast %133 : vector<1x8x32xf32> to vector<8x32xf32>
      %c0_70 = arith.constant 0 : index
      %c0_71 = arith.constant 0 : index
      %c0_72 = arith.constant 0 : index
      %135 = vector.load %arg16[%c0_70, %c0_71, %c0_72] : memref<1x8x32xf32, #tpu.memory_space<vmem>>, vector<1x8x32xf32>
      %136 = vector.shape_cast %135 : vector<1x8x32xf32> to vector<8x32xf32>
      %137 = vector.shape_cast %134 : vector<8x32xf32> to vector<1x8x32xf32>
      tpu.vector_store %arg16[%c0_70, %c0_71, %c0_72], %137 {strides = array<i32>} : memref<1x8x32xf32, #tpu.memory_space<vmem>>, vector<1x8x32xf32>,
    } else {
    }
    %c0 = arith.constant 0 : index
    %c0_1 = arith.constant 0 : index
    %c0_2 = arith.constant 0 : index
    %3 = vector.load %arg16[%c0, %c0_1, %c0_2] : memref<1x8x32xf32, #tpu.memory_space<vmem>>, vector<1x8x32xf32>
    %4 = vector.shape_cast %3 : vector<1x8x32xf32> to vector<8x32xf32>
    %c0_3 = arith.constant 0 : index
    %c0_4 = arith.constant 0 : index
    %c0_5 = arith.constant 0 : index
    %5 = vector.load %arg4[%c0_3, %c0_4, %c0_5] : memref<1x32x96xf32, #tpu.memory_space<vmem>>, vector<1x32x96xf32>
    %6 = vector.shape_cast %5 : vector<1x32x96xf32> to vector<32x96xf32>
    %cst = arith.constant dense<0.000000e+00> : vector<8x96xf32>
    %7 = tpu.matmul %4, %6, %cst {dimension_numbers = #tpu.dot_dimension_numbers<[1], [0], [0], [1], [0, 0, 1, 1], [], []>} : vector<8x32xf32>, vector<32x96xf32>, vector<8x96xf32> -> vector<8x96xf32>
    %c0_6 = arith.constant 0 : index
    %c0_7 = arith.constant 0 : index
    %c0_8 = arith.constant 0 : index
    %8 = vector.load %arg5[%c0_6, %c0_7, %c0_8] : memref<1x1x96xf32, #tpu.memory_space<vmem>>, vector<1x1x96xf32>
    %9 = vector.shape_cast %8 : vector<1x1x96xf32> to vector<1x96xf32>
    %10 = vector.broadcast %9 : vector<1x96xf32> to vector<8x96xf32>
    %11 = arith.addf %7, %10 : vector<8x96xf32>
    %12 = vector.extract_strided_slice %11 {offsets = [0, 0], sizes = [8, 32], strides = [1, 1]} : vector<8x96xf32> to vector<8x32xf32>
    %13 = vector.shape_cast %12 : vector<8x32xf32> to vector<8x4x8xf32>
    %14 = tpu.transpose %13, [1, 0, 2] : vector<8x4x8xf32> -> vector<4x8x8xf32>
    %15 = vector.extract_strided_slice %11 {offsets = [0, 32], sizes = [8, 32], strides = [1, 1]} : vector<8x96xf32> to vector<8x32xf32>
    %16 = vector.shape_cast %15 : vector<8x32xf32> to vector<8x4x8xf32>
    %17 = tpu.transpose %16, [1, 0, 2] : vector<8x4x8xf32> -> vector<4x8x8xf32>
    %18 = vector.extract_strided_slice %11 {offsets = [0, 64], sizes = [8, 32], strides = [1, 1]} : vector<8x96xf32> to vector<8x32xf32>
    %19 = vector.shape_cast %18 : vector<8x32xf32> to vector<8x4x8xf32>
    %20 = tpu.transpose %19, [1, 0, 2] : vector<8x4x8xf32> -> vector<4x8x8xf32>
    "tpu.trace_start"() <{level = 10 : i32, message = "hqd,hkd->hqk"}> : () -> ()
    %cst_9 = arith.constant dense<0.000000e+00> : vector<4x8x8xf32>
    %21 = tpu.matmul %14, %17, %cst_9 {dimension_numbers = #tpu.dot_dimension_numbers<[2], [2], [1], [1], [0, 0, 0, 1, 1, 1], [0], [0]>} : vector<4x8x8xf32>, vector<4x8x8xf32>, vector<4x8x8xf32> -> vector<4x8x8xf32>
    "tpu.trace_stop"() : () -> ()
    %c0_10 = arith.constant 0 : index
    %c0_11 = arith.constant 0 : index
    %c0_12 = arith.constant 0 : index
    %c0_13 = arith.constant 0 : index
    %22 = vector.load %arg3[%c0_10, %c0_11, %c0_12, %c0_13] : memref<1x1x8x8xf32, #tpu.memory_space<vmem>>, vector<1x1x8x8xf32>
    %23 = vector.shape_cast %22 : vector<1x1x8x8xf32> to vector<1x8x8xf32>
    %24 = vector.broadcast %23 : vector<1x8x8xf32> to vector<4x8x8xf32>
    %25 = arith.addf %21, %24 : vector<4x8x8xf32>
    %cst_14 = arith.constant dense<0xFF800000> : vector<4x8xf32>
    %26 = vector.multi_reduction <maximumf>, %25, %cst_14 [2] : vector<4x8x8xf32> to vector<4x8xf32>
    %27 = vector.shape_cast %26 : vector<4x8xf32> to vector<4x8x1xf32>
    %28 = vector.broadcast %27 : vector<4x8x1xf32> to vector<4x8x8xf32>
    %29 = arith.subf %25, %28 : vector<4x8x8xf32>
    %30 = math.exp %29 : vector<4x8x8xf32>
    %cst_15 = arith.constant dense<0.000000e+00> : vector<4x8xf32>
    %31 = vector.multi_reduction <add>, %30, %cst_15 [2] : vector<4x8x8xf32> to vector<4x8xf32>
    %32 = vector.shape_cast %31 : vector<4x8xf32> to vector<4x8x1xf32>
    %33 = vector.broadcast %32 : vector<4x8x1xf32> to vector<4x8x8xf32>
    %34 = arith.divf %30, %33 : vector<4x8x8xf32>
    "tpu.trace_start"() <{level = 10 : i32, message = "hqk,hkd->hqd"}> : () -> ()
    %cst_16 = arith.constant dense<0.000000e+00> : vector<4x8x8xf32>
    %35 = tpu.matmul %34, %20, %cst_16 {dimension_numbers = #tpu.dot_dimension_numbers<[2], [1], [1], [2], [0, 0, 0, 1, 1, 2], [0], [0]>} : vector<4x8x8xf32>, vector<4x8x8xf32>, vector<4x8x8xf32> -> vector<4x8x8xf32>
    "tpu.trace_stop"() : () -> ()
    %36 = tpu.transpose %35, [1, 0, 2] : vector<4x8x8xf32> -> vector<8x4x8xf32>
    %37 = vector.shape_cast %36 : vector<8x4x8xf32> to vector<8x32xf32>
    %c0_17 = arith.constant 0 : index
    %c0_18 = arith.constant 0 : index
    %c0_19 = arith.constant 0 : index
    %38 = vector.load %arg6[%c0_17, %c0_18, %c0_19] : memref<1x32x32xf32, #tpu.memory_space<vmem>>, vector<1x32x32xf32>
    %39 = vector.shape_cast %38 : vector<1x32x32xf32> to vector<32x32xf32>
    %cst_20 = arith.constant dense<0.000000e+00> : vector<8x32xf32>
    %40 = tpu.matmul %37, %39, %cst_20 {dimension_numbers = #tpu.dot_dimension_numbers<[1], [0], [0], [1], [0, 0, 1, 1], [], []>} : vector<8x32xf32>, vector<32x32xf32>, vector<8x32xf32> -> vector<8x32xf32>
    %c0_21 = arith.constant 0 : index
    %c0_22 = arith.constant 0 : index
    %c0_23 = arith.constant 0 : index
    %41 = vector.load %arg7[%c0_21, %c0_22, %c0_23] : memref<1x1x32xf32, #tpu.memory_space<vmem>>, vector<1x1x32xf32>
    %42 = vector.shape_cast %41 : vector<1x1x32xf32> to vector<1x32xf32>
    %43 = vector.broadcast %42 : vector<1x32xf32> to vector<8x32xf32>
    %44 = arith.addf %40, %43 : vector<8x32xf32>
    %45 = arith.addf %44, %4 : vector<8x32xf32>
    %c0_24 = arith.constant 0 : index
    %c0_25 = arith.constant 0 : index
    %c0_26 = arith.constant 0 : index
    %46 = vector.load %arg8[%c0_24, %c0_25, %c0_26] : memref<1x1x32xf32, #tpu.memory_space<vmem>>, vector<1x1x32xf32>
    %47 = vector.shape_cast %46 : vector<1x1x32xf32> to vector<1x32xf32>
    %c0_27 = arith.constant 0 : index
    %c0_28 = arith.constant 0 : index
    %c0_29 = arith.constant 0 : index
    %48 = vector.load %arg9[%c0_27, %c0_28, %c0_29] : memref<1x1x32xf32, #tpu.memory_space<vmem>>, vector<1x1x32xf32>
    %49 = vector.shape_cast %48 : vector<1x1x32xf32> to vector<1x32xf32>
    %cst_30 = arith.constant dense<0.000000e+00> : vector<8xf32>
    %50 = vector.multi_reduction <add>, %45, %cst_30 [1] : vector<8x32xf32> to vector<8xf32>
    %51 = vector.shape_cast %50 : vector<8xf32> to vector<8x1xf32>
    %cst_31 = arith.constant 3.200000e+01 : f32
    %52 = vector.broadcast %cst_31 : f32 to vector<8x1xf32>
    %53 = arith.divf %51, %52 : vector<8x1xf32>
    %54 = vector.broadcast %53 : vector<8x1xf32> to vector<8x32xf32>
    %55 = arith.subf %45, %54 : vector<8x32xf32>
    %56 = vector.broadcast %53 : vector<8x1xf32> to vector<8x32xf32>
    %57 = arith.subf %45, %56 : vector<8x32xf32>
    %58 = arith.mulf %55, %57 : vector<8x32xf32>
    %cst_32 = arith.constant dense<0.000000e+00> : vector<8xf32>
    %59 = vector.multi_reduction <add>, %58, %cst_32 [1] : vector<8x32xf32> to vector<8xf32>
    %60 = vector.shape_cast %59 : vector<8xf32> to vector<8x1xf32>
    %cst_33 = arith.constant 3.200000e+01 : f32
    %61 = vector.broadcast %cst_33 : f32 to vector<8x1xf32>
    %62 = arith.divf %60, %61 : vector<8x1xf32>
    %cst_34 = arith.constant 9.99999996E-13 : f32
    %63 = vector.broadcast %cst_34 : f32 to vector<8x1xf32>
    %64 = arith.addf %62, %63 : vector<8x1xf32>
    %65 = math.rsqrt %64 : vector<8x1xf32>
    %66 = vector.broadcast %53 : vector<8x1xf32> to vector<8x32xf32>
    %67 = arith.subf %45, %66 : vector<8x32xf32>
    %68 = vector.broadcast %65 : vector<8x1xf32> to vector<8x32xf32>
    %69 = arith.mulf %67, %68 : vector<8x32xf32>
    %70 = vector.broadcast %47 : vector<1x32xf32> to vector<8x32xf32>
    %71 = arith.mulf %69, %70 : vector<8x32xf32>
    %72 = vector.broadcast %49 : vector<1x32xf32> to vector<8x32xf32>
    %73 = arith.addf %71, %72 : vector<8x32xf32>
    %c0_35 = arith.constant 0 : index
    %c0_36 = arith.constant 0 : index
    %c0_37 = arith.constant 0 : index
    %74 = vector.load %arg10[%c0_35, %c0_36, %c0_37] : memref<1x32x64xf32, #tpu.memory_space<vmem>>, vector<1x32x64xf32>
    %75 = vector.shape_cast %74 : vector<1x32x64xf32> to vector<32x64xf32>
    %cst_38 = arith.constant dense<0.000000e+00> : vector<8x64xf32>
    %76 = tpu.matmul %73, %75, %cst_38 {dimension_numbers = #tpu.dot_dimension_numbers<[1], [0], [0], [1], [0, 0, 1, 1], [], []>} : vector<8x32xf32>, vector<32x64xf32>, vector<8x64xf32> -> vector<8x64xf32>
    %c0_39 = arith.constant 0 : index
    %c0_40 = arith.constant 0 : index
    %c0_41 = arith.constant 0 : index
    %77 = vector.load %arg11[%c0_39, %c0_40, %c0_41] : memref<1x1x64xf32, #tpu.memory_space<vmem>>, vector<1x1x64xf32>
    %78 = vector.shape_cast %77 : vector<1x1x64xf32> to vector<1x64xf32>
    %79 = vector.broadcast %78 : vector<1x64xf32> to vector<8x64xf32>
    %80 = arith.addf %76, %79 : vector<8x64xf32>
    %cst_42 = arith.constant 5.000000e-01 : f32
    %81 = vector.broadcast %cst_42 : f32 to vector<8x64xf32>
    %82 = arith.mulf %81, %80 : vector<8x64xf32>
    %cst_43 = arith.constant 4.471500e-02 : f32
    %83 = vector.broadcast %cst_43 : f32 to vector<8x64xf32>
    %84 = arith.mulf %83, %80 : vector<8x64xf32>
    %85 = arith.mulf %84, %80 : vector<8x64xf32>
    %86 = arith.mulf %85, %80 : vector<8x64xf32>
    %87 = arith.addf %80, %86 : vector<8x64xf32>
    %cst_44 = arith.constant 0.797884583 : f32
    %88 = vector.broadcast %cst_44 : f32 to vector<8x64xf32>
    %89 = arith.mulf %88, %87 : vector<8x64xf32>
    %90 = math.tanh %89 : vector<8x64xf32>
    %cst_45 = arith.constant 1.000000e+00 : f32
    %91 = vector.broadcast %cst_45 : f32 to vector<8x64xf32>
    %92 = arith.addf %91, %90 : vector<8x64xf32>
    %93 = arith.mulf %82, %92 : vector<8x64xf32>
    %c0_46 = arith.constant 0 : index
    %c0_47 = arith.constant 0 : index
    %c0_48 = arith.constant 0 : index
    %94 = vector.load %arg12[%c0_46, %c0_47, %c0_48] : memref<1x64x32xf32, #tpu.memory_space<vmem>>, vector<1x64x32xf32>
    %95 = vector.shape_cast %94 : vector<1x64x32xf32> to vector<64x32xf32>
    %cst_49 = arith.constant dense<0.000000e+00> : vector<8x32xf32>
    %96 = tpu.matmul %93, %95, %cst_49 {dimension_numbers = #tpu.dot_dimension_numbers<[1], [0], [0], [1], [0, 0, 1, 1], [], []>} : vector<8x64xf32>, vector<64x32xf32>, vector<8x32xf32> -> vector<8x32xf32>
    %c0_50 = arith.constant 0 : index
    %c0_51 = arith.constant 0 : index
    %c0_52 = arith.constant 0 : index
    %97 = vector.load %arg13[%c0_50, %c0_51, %c0_52] : memref<1x1x32xf32, #tpu.memory_space<vmem>>, vector<1x1x32xf32>
    %98 = vector.shape_cast %97 : vector<1x1x32xf32> to vector<1x32xf32>
    %99 = vector.broadcast %98 : vector<1x32xf32> to vector<8x32xf32>
    %100 = arith.addf %96, %99 : vector<8x32xf32>
    %101 = arith.addf %100, %73 : vector<8x32xf32>
    %c0_53 = arith.constant 0 : index
    %c0_54 = arith.constant 0 : index
    %c0_55 = arith.constant 0 : index
    %102 = vector.load %arg14[%c0_53, %c0_54, %c0_55] : memref<1x1x32xf32, #tpu.memory_space<vmem>>, vector<1x1x32xf32>
    %103 = vector.shape_cast %102 : vector<1x1x32xf32> to vector<1x32xf32>
    %c0_56 = arith.constant 0 : index
    %c0_57 = arith.constant 0 : index
    %c0_58 = arith.constant 0 : index
    %104 = vector.load %arg15[%c0_56, %c0_57, %c0_58] : memref<1x1x32xf32, #tpu.memory_space<vmem>>, vector<1x1x32xf32>
    %105 = vector.shape_cast %104 : vector<1x1x32xf32> to vector<1x32xf32>
    %cst_59 = arith.constant dense<0.000000e+00> : vector<8xf32>
    %106 = vector.multi_reduction <add>, %101, %cst_59 [1] : vector<8x32xf32> to vector<8xf32>
    %107 = vector.shape_cast %106 : vector<8xf32> to vector<8x1xf32>
    %cst_60 = arith.constant 3.200000e+01 : f32
    %108 = vector.broadcast %cst_60 : f32 to vector<8x1xf32>
    %109 = arith.divf %107, %108 : vector<8x1xf32>
    %110 = vector.broadcast %109 : vector<8x1xf32> to vector<8x32xf32>
    %111 = arith.subf %101, %110 : vector<8x32xf32>
    %112 = vector.broadcast %109 : vector<8x1xf32> to vector<8x32xf32>
    %113 = arith.subf %101, %112 : vector<8x32xf32>
    %114 = arith.mulf %111, %113 : vector<8x32xf32>
    %cst_61 = arith.constant dense<0.000000e+00> : vector<8xf32>
    %115 = vector.multi_reduction <add>, %114, %cst_61 [1] : vector<8x32xf32> to vector<8xf32>
    %116 = vector.shape_cast %115 : vector<8xf32> to vector<8x1xf32>
    %cst_62 = arith.constant 3.200000e+01 : f32
    %117 = vector.broadcast %cst_62 : f32 to vector<8x1xf32>
    %118 = arith.divf %116, %117 : vector<8x1xf32>
    %cst_63 = arith.constant 9.99999996E-13 : f32
    %119 = vector.broadcast %cst_63 : f32 to vector<8x1xf32>
    %120 = arith.addf %118, %119 : vector<8x1xf32>
    %121 = math.rsqrt %120 : vector<8x1xf32>
    %122 = vector.broadcast %109 : vector<8x1xf32> to vector<8x32xf32>
    %123 = arith.subf %101, %122 : vector<8x32xf32>
    %124 = vector.broadcast %121 : vector<8x1xf32> to vector<8x32xf32>
    %125 = arith.mulf %123, %124 : vector<8x32xf32>
    %126 = vector.broadcast %103 : vector<1x32xf32> to vector<8x32xf32>
    %127 = arith.mulf %125, %126 : vector<8x32xf32>
    %128 = vector.broadcast %105 : vector<1x32xf32> to vector<8x32xf32>
    %129 = arith.addf %127, %128 : vector<8x32xf32>
    %c0_64 = arith.constant 0 : index
    %c0_65 = arith.constant 0 : index
    %c0_66 = arith.constant 0 : index
    %130 = vector.load %arg16[%c0_64, %c0_65, %c0_66] : memref<1x8x32xf32, #tpu.memory_space<vmem>>, vector<1x8x32xf32>
    %131 = vector.shape_cast %130 : vector<1x8x32xf32> to vector<8x32xf32>
    %132 = vector.shape_cast %129 : vector<8x32xf32> to vector<1x8x32xf32>
    tpu.vector_store %arg16[%c0_64, %c0_65, %c0_66], %132 {strides = array<i32>} : memref<1x8x32xf32, #tpu.memory_space<vmem>>, vector<1x8x32xf32>,
    return
  }
  func.func @transform_0(%arg0: i32, %arg1: i32) -> (i32, i32, i32) {
    %c0_i32 = arith.constant 0 : i32
    %c0_i32_0 = arith.constant 0 : i32
    %c0_i32_1 = arith.constant 0 : i32
    return %arg0, %c0_i32, %c0_i32_0 : i32, i32, i32
  }
  func.func @transform_1(%arg0: i32, %arg1: i32) -> (i32, i32, i32, i32) {
    %c0_i32 = arith.constant 0 : i32
    %c0_i32_0 = arith.constant 0 : i32
    %c0_i32_1 = arith.constant 0 : i32
    %c0_i32_2 = arith.constant 0 : i32
    return %arg0, %c0_i32, %c0_i32_0, %c0_i32_1 : i32, i32, i32, i32
  }
  func.func @transform_2(%arg0: i32, %arg1: i32) -> (i32, i32, i32) {
    %c0_i32 = arith.constant 0 : i32
    %c0_i32_0 = arith.constant 0 : i32
    %c0_i32_1 = arith.constant 0 : i32
    return %arg1, %c0_i32, %c0_i32_0 : i32, i32, i32
  }
  func.func @transform_3(%arg0: i32, %arg1: i32) -> (i32, i32, i32) {
    %c0_i32 = arith.constant 0 : i32
    %c0_i32_0 = arith.constant 0 : i32
    %c0_i32_1 = arith.constant 0 : i32
    return %arg1, %c0_i32, %c0_i32_0 : i32, i32, i32
  }
  func.func @transform_4(%arg0: i32, %arg1: i32) -> (i32, i32, i32) {
    %c0_i32 = arith.constant 0 : i32
    %c0_i32_0 = arith.constant 0 : i32
    %c0_i32_1 = arith.constant 0 : i32
    return %arg1, %c0_i32, %c0_i32_0 : i32, i32, i32
  }
  func.func @transform_5(%arg0: i32, %arg1: i32) -> (i32, i32, i32) {
    %c0_i32 = arith.constant 0 : i32
    %c0_i32_0 = arith.constant 0 : i32
    %c0_i32_1 = arith.constant 0 : i32
    return %arg1, %c0_i32, %c0_i32_0 : i32, i32, i32
  }
  func.func @transform_6(%arg0: i32, %arg1: i32) -> (i32, i32, i32) {
    %c0_i32 = arith.constant 0 : i32
    %c0_i32_0 = arith.constant 0 : i32
    %c0_i32_1 = arith.constant 0 : i32
    return %arg1, %c0_i32, %c0_i32_0 : i32, i32, i32
  }
  func.func @transform_7(%arg0: i32, %arg1: i32) -> (i32, i32, i32) {
    %c0_i32 = arith.constant 0 : i32
    %c0_i32_0 = arith.constant 0 : i32
    %c0_i32_1 = arith.constant 0 : i32
    return %arg1, %c0_i32, %c0_i32_0 : i32, i32, i32
  }
  func.func @transform_8(%arg0: i32, %arg1: i32) -> (i32, i32, i32) {
    %c0_i32 = arith.constant 0 : i32
    %c0_i32_0 = arith.constant 0 : i32
    %c0_i32_1 = arith.constant 0 : i32
    return %arg1, %c0_i32, %c0_i32_0 : i32, i32, i32
  }
  func.func @transform_9(%arg0: i32, %arg1: i32) -> (i32, i32, i32) {
    %c0_i32 = arith.constant 0 : i32
    %c0_i32_0 = arith.constant 0 : i32
    %c0_i32_1 = arith.constant 0 : i32
    return %arg1, %c0_i32, %c0_i32_0 : i32, i32, i32
  }
  func.func @transform_10(%arg0: i32, %arg1: i32) -> (i32, i32, i32) {
    %c0_i32 = arith.constant 0 : i32
    %c0_i32_0 = arith.constant 0 : i32
    %c0_i32_1 = arith.constant 0 : i32
    return %arg1, %c0_i32, %c0_i32_0 : i32, i32, i32
  }
  func.func @transform_11(%arg0: i32, %arg1: i32) -> (i32, i32, i32) {
    %c0_i32 = arith.constant 0 : i32
    %c0_i32_0 = arith.constant 0 : i32
    %c0_i32_1 = arith.constant 0 : i32
    return %arg1, %c0_i32, %c0_i32_0 : i32, i32, i32
  }
  func.func @transform_12(%arg0: i32, %arg1: i32) -> (i32, i32, i32) {
    %c0_i32 = arith.constant 0 : i32
    %c0_i32_0 = arith.constant 0 : i32
    %c0_i32_1 = arith.constant 0 : i32
    return %arg1, %c0_i32, %c0_i32_0 : i32, i32, i32
  }
  func.func @transform_13(%arg0: i32, %arg1: i32) -> (i32, i32, i32) {
    %c0_i32 = arith.constant 0 : i32
    %c0_i32_0 = arith.constant 0 : i32
    %c0_i32_1 = arith.constant 0 : i32
    return %arg1, %c0_i32, %c0_i32_0 : i32, i32, i32
  }
  func.func @transform_14(%arg0: i32, %arg1: i32) -> (i32, i32, i32) {
    %c0_i32 = arith.constant 0 : i32
    %c0_i32_0 = arith.constant 0 : i32
    %c0_i32_1 = arith.constant 0 : i32
    return %arg0, %c0_i32, %c0_i32_0 : i32, i32, i32
  }
}

</mosaic_0001>

<llo_original>
// kernel: tpu_custom_call.1
$region0: #{tpu_custom_call.1}
  #allocation0 [shape = 'u32[]', space=smem, size = 0x4, offset = 0x4, fixed_abs, tag = 'smem constant byte address 0x4 - core index']
  #allocation1 [shape = 'u32[144,128]{1,0:T(1,128)}', space=vmem, size = 0x12000, scoped, tag = 'internal scratch']
  %s0 = inlined_call_operand.hbm [shape: f32[2,8,32], index: 0, kind: input, shape index: {}]
  %s1 = inlined_call_operand.hbm [shape: f32[2,1,8,8], index: 1, kind: input, shape index: {}]
  %s2 = inlined_call_operand.vmem [shape: f32[2,32,96], index: 2, kind: input, shape index: {}]
  %s3 = inlined_call_operand.vmem [shape: f32[2,1,96], index: 3, kind: input, shape index: {}]
  %s4 = inlined_call_operand.vmem [shape: f32[2,32,32], index: 4, kind: input, shape index: {}]
  %s5 = inlined_call_operand.vmem [shape: f32[2,1,32], index: 5, kind: input, shape index: {}]
  %s6 = inlined_call_operand.vmem [shape: f32[2,1,32], index: 6, kind: input, shape index: {}]
  %s7 = inlined_call_operand.vmem [shape: f32[2,1,32], index: 7, kind: input, shape index: {}]
  %s8 = inlined_call_operand.vmem [shape: f32[2,32,64], index: 8, kind: input, shape index: {}]
  %s9 = inlined_call_operand.vmem [shape: f32[2,1,64], index: 9, kind: input, shape index: {}]
  %s10 = inlined_call_operand.vmem [shape: f32[2,64,32], index: 10, kind: input, shape index: {}]
  %s11 = inlined_call_operand.vmem [shape: f32[2,1,32], index: 11, kind: input, shape index: {}]
  %s12 = inlined_call_operand.vmem [shape: f32[2,1,32], index: 12, kind: input, shape index: {}]
  %s13 = inlined_call_operand.vmem [shape: f32[2,1,32], index: 13, kind: input, shape index: {}]
  %s14 = inlined_call_operand.hbm [shape: f32[2,8,32], index: 14, kind: output, shape index: {}]
  %s15 = sld [smem:[#allocation0]]
  $region101: #{tpu_custom_call.1} parent=0
    _
  %s17 = ssub.s32 1, %s15
  %s18 = scalar_select 0, %s17, %s15
  $region1: #{tpu_custom_call.1} parent=0
    #allocation2 [shape = 'u8[8192]{0}', space=vmem, size = 0x2000, scoped, tag = 'input window, operand 0']
    #allocation3 [shape = 's32[2]{0}', space=sflag, size = 0x8, scoped, tag = 'scoped memory for tpu_custom_call.1']
    #allocation4 [shape = 's32[2]{0}', space=sflag, size = 0x8, scoped, tag = 'scoped memory for tpu_custom_call.1']
    #allocation5 [shape = 'u8[8192]{0}', space=vmem, size = 0x2000, scoped, tag = 'input window, operand 1']
    #allocation6 [shape = 's32[2]{0}', space=sflag, size = 0x8, scoped, tag = 'scoped memory for tpu_custom_call.1']
    #allocation7 [shape = 'u8[8192]{0}', space=vmem, size = 0x2000, scoped, tag = 'output window, operand 0']
    %19 = vsyncpa [#allocation3], 0
    %s20 = scalar_lea.sflag [#allocation3], 1
    %21 = vsyncpa %s20, 0
    %22 = vsyncpa [#allocation6], 0
    %s23 = scalar_lea.sflag [#allocation6], 1
    %24 = vsyncpa %s23, 0
    %25 = vsyncpa [#allocation4], 0
    %s26 = scalar_lea.sflag [#allocation4], 1
    %27 = vsyncpa %s26, 0
    loop: start=0, step=1, limit=6
    $region2: #{tpu_custom_call.1} parent=1 // loop_pre_header
      _
    $region3: #{tpu_custom_call.1} parent=1 // loop_header
      %s29 = sphi 0, %s33
      %p30 = scmp.ge.s32.totalorder %s29, 6
      %s36 = sphi 0, %s48
      %s37 = sphi 0, %s44
      %s38 = sphi 0, %s36
      %s39 = sphi 0, %s37
      %s40 = sphi 0, %s38
      %s41 = sphi 0, %s39
      %s51 = sphi 0, %s53
      %s54 = sphi 0, %s51
      %s55 = sphi 0, %s54
      %s71 = sphi 0, %s55
      %s77 = sphi 0, %s79
      %s80 = sphi 0, %s77
      %s81 = sphi 0, %s80
      %s97 = sphi 0, %s81
      %s103 = sphi 0, %s105
      %s106 = sphi 0, %s103
      %s107 = sphi 0, %s106
      %s123 = sphi 0, %s107
      %s129 = sphi 0, %s131
      %s132 = sphi 0, %s129
      %s133 = sphi 0, %s132
      %s149 = sphi 0, %s133
      %s155 = sphi 0, %s157
      %s158 = sphi 0, %s155
      %s159 = sphi 0, %s158
      %s175 = sphi 0, %s159
      %s181 = sphi 0, %s183
      %s184 = sphi 0, %s181
      %s185 = sphi 0, %s184
      %s201 = sphi 0, %s185
      %s207 = sphi 0, %s209
      %s210 = sphi 0, %s207
      %s211 = sphi 0, %s210
      %s227 = sphi 0, %s211
      %s233 = sphi 0, %s235
      %s236 = sphi 0, %s233
      %s237 = sphi 0, %s236
      %s253 = sphi 0, %s237
      %s259 = sphi 0, %s261
      %s262 = sphi 0, %s259
      %s263 = sphi 0, %s262
      %s279 = sphi 0, %s263
      %s285 = sphi 0, %s287
      %s288 = sphi 0, %s285
      %s289 = sphi 0, %s288
      %s305 = sphi 0, %s289
      %s311 = sphi 0, %s313
      %s314 = sphi 0, %s311
      %s315 = sphi 0, %s314
      %s331 = sphi 0, %s315
      %s337 = sphi 0, %s339
      %s340 = sphi 0, %s337
      %s341 = sphi 0, %s340
      %s357 = sphi 0, %s341
      %s363 = sphi 0, %s365
      %s366 = sphi 0, %s363
      %s367 = sphi 0, %s366
      %s383 = sphi 0, %s367
      %s389 = sphi 0, %s391
      %s392 = sphi 0, %s389
      %s393 = sphi 0, %s392
      %s409 = sphi 0, %s393
      %s415 = sphi 0, %s417
      %s418 = sphi 0, %s415
      %s419 = sphi 0, %s418
      %s435 = sphi 0, %s419
    $region4: #{tpu_custom_call.1} parent=1 // loop_header_branch
      %32 = sbr.rel (%p30) target = $region8
    $region5: #{tpu_custom_call.1} parent=1 // loop_body
      %s34 = ssub.s32 %s29, 1
      %s35 = ssub.s32 %s29, 2
      %s42 = sadd.s32 1, %s37
      %p43 = scmp.ge.s32.totalorder %s42, 2
      %s44 = scalar_select %p43, 0, %s42
      %s45 = sadd.s32 1, %s36
      %s46 = scalar_select %p43, %s45, %s36
      %p47 = scmp.ge.s32.totalorder %s46, 2
      %s48 = scalar_select %p47, 0, %s46
      %s49 = ssub.s32 %s36, %s48
      %p50 = scmp.eq.s32.totalorder %s49, 0
      %s52 = sadd.s32 %s51, 1
      %s53 = scalar_select %p50, %s51, %s52
      %p56 = pneg %p50
      %p57 = scmp.eq.s32.totalorder %s29, 3
      %p58 = por %p56, %p57
      %p59 = scmp.ne.s32.totalorder %s51, %s54
      %p60 = scmp.eq.s32.totalorder %s29, 0
      %p61 = por %p59, %p60
      %p62 = scmp.ne.s32.totalorder %s51, %s54
      %p63 = scmp.eq.s32.totalorder %s34, 3
      %p64 = por %p62, %p63
      %p65 = scmp.ne.s32.totalorder %s54, %s55
      %p66 = scmp.eq.s32.totalorder %s34, 0
      %p67 = por %p65, %p66
      %p68 = scmp.ne.s32.totalorder %s54, %s55
      %p69 = scmp.eq.s32.totalorder %s35, 3
      %p70 = por %p68, %p69
      %p72 = scmp.ne.s32.totalorder %s55, %s71
      %p73 = scmp.eq.s32.totalorder %s35, 0
      %p74 = por %p72, %p73
      %s75 = ssub.s32 %s36, %s48
      %p76 = scmp.eq.s32.totalorder %s75, 0
      %s78 = sadd.s32 %s77, 1
      %s79 = scalar_select %p76, %s77, %s78
      %p82 = pneg %p76
      %p83 = scmp.eq.s32.totalorder %s29, 3
      %p84 = por %p82, %p83
      %p85 = scmp.ne.s32.totalorder %s77, %s80
      %p86 = scmp.eq.s32.totalorder %s29, 0
      %p87 = por %p85, %p86
      %p88 = scmp.ne.s32.totalorder %s77, %s80
      %p89 = scmp.eq.s32.totalorder %s34, 3
      %p90 = por %p88, %p89
      %p91 = scmp.ne.s32.totalorder %s80, %s81
      %p92 = scmp.eq.s32.totalorder %s34, 0
      %p93 = por %p91, %p92
      %p94 = scmp.ne.s32.totalorder %s80, %s81
      %p95 = scmp.eq.s32.totalorder %s35, 3
      %p96 = por %p94, %p95
      %p98 = scmp.ne.s32.totalorder %s81, %s97
      %p99 = scmp.eq.s32.totalorder %s35, 0
      %p100 = por %p98, %p99
      %s101 = ssub.s32 %s37, %s44
      %p102 = scmp.eq.s32.totalorder %s101, 0
      %s104 = sadd.s32 %s103, 1
      %s105 = scalar_select %p102, %s103, %s104
      %p108 = pneg %p102
      %p109 = scmp.eq.s32.totalorder %s29, 3
      %p110 = por %p108, %p109
      %p111 = scmp.ne.s32.totalorder %s103, %s106
      %p112 = scmp.eq.s32.totalorder %s29, 0
      %p113 = por %p111, %p112
      %p114 = scmp.ne.s32.totalorder %s103, %s106
      %p115 = scmp.eq.s32.totalorder %s34, 3
      %p116 = por %p114, %p115
      %p117 = scmp.ne.s32.totalorder %s106, %s107
      %p118 = scmp.eq.s32.totalorder %s34, 0
      %p119 = por %p117, %p118
      %p120 = scmp.ne.s32.totalorder %s106, %s107
      %p121 = scmp.eq.s32.totalorder %s35, 3
      %p122 = por %p120, %p121
      %p124 = scmp.ne.s32.totalorder %s107, %s123
      %p125 = scmp.eq.s32.totalorder %s35, 0
      %p126 = por %p124, %p125
      %s127 = ssub.s32 %s37, %s44
      %p128 = scmp.eq.s32.totalorder %s127, 0
      %s130 = sadd.s32 %s129, 1
      %s131 = scalar_select %p128, %s129, %s130
      %p134 = pneg %p128
      %p135 = scmp.eq.s32.totalorder %s29, 3
      %p136 = por %p134, %p135
      %p137 = scmp.ne.s32.totalorder %s129, %s132
      %p138 = scmp.eq.s32.totalorder %s29, 0
      %p139 = por %p137, %p138
      %p140 = scmp.ne.s32.totalorder %s129, %s132
      %p141 = scmp.eq.s32.totalorder %s34, 3
      %p142 = por %p140, %p141
      %p143 = scmp.ne.s32.totalorder %s132, %s133
      %p144 = scmp.eq.s32.totalorder %s34, 0
      %p145 = por %p143, %p144
      %p146 = scmp.ne.s32.totalorder %s132, %s133
      %p147 = scmp.eq.s32.totalorder %s35, 3
      %p148 = por %p146, %p147
      %p150 = scmp.ne.s32.totalorder %s133, %s149
      %p151 = scmp.eq.s32.totalorder %s35, 0
      %p152 = por %p150, %p151
      %s153 = ssub.s32 %s37, %s44
      %p154 = scmp.eq.s32.totalorder %s153, 0
      %s156 = sadd.s32 %s155, 1
      %s157 = scalar_select %p154, %s155, %s156
      %p160 = pneg %p154
      %p161 = scmp.eq.s32.totalorder %s29, 3
      %p162 = por %p160, %p161
      %p163 = scmp.ne.s32.totalorder %s155, %s158
      %p164 = scmp.eq.s32.totalorder %s29, 0
      %p165 = por %p163, %p164
      %p166 = scmp.ne.s32.totalorder %s155, %s158
      %p167 = scmp.eq.s32.totalorder %s34, 3
      %p168 = por %p166, %p167
      %p169 = scmp.ne.s32.totalorder %s158, %s159
      %p170 = scmp.eq.s32.totalorder %s34, 0
      %p171 = por %p169, %p170
      %p172 = scmp.ne.s32.totalorder %s158, %s159
      %p173 = scmp.eq.s32.totalorder %s35, 3
      %p174 = por %p172, %p173
      %p176 = scmp.ne.s32.totalorder %s159, %s175
      %p177 = scmp.eq.s32.totalorder %s35, 0
      %p178 = por %p176, %p177
      %s179 = ssub.s32 %s37, %s44
      %p180 = scmp.eq.s32.totalorder %s179, 0
      %s182 = sadd.s32 %s181, 1
      %s183 = scalar_select %p180, %s181, %s182
      %p186 = pneg %p180
      %p187 = scmp.eq.s32.totalorder %s29, 3
      %p188 = por %p186, %p187
      %p189 = scmp.ne.s32.totalorder %s181, %s184
      %p190 = scmp.eq.s32.totalorder %s29, 0
      %p191 = por %p189, %p190
      %p192 = scmp.ne.s32.totalorder %s181, %s184
      %p193 = scmp.eq.s32.totalorder %s34, 3
      %p194 = por %p192, %p193
      %p195 = scmp.ne.s32.totalorder %s184, %s185
      %p196 = scmp.eq.s32.totalorder %s34, 0
      %p197 = por %p195, %p196
      %p198 = scmp.ne.s32.totalorder %s184, %s185
      %p199 = scmp.eq.s32.totalorder %s35, 3
      %p200 = por %p198, %p199
      %p202 = scmp.ne.s32.totalorder %s185, %s201
      %p203 = scmp.eq.s32.totalorder %s35, 0
      %p204 = por %p202, %p203
      %s205 = ssub.s32 %s37, %s44
      %p206 = scmp.eq.s32.totalorder %s205, 0
      %s208 = sadd.s32 %s207, 1
      %s209 = scalar_select %p206, %s207, %s208
      %p212 = pneg %p206
      %p213 = scmp.eq.s32.totalorder %s29, 3
      %p214 = por %p212, %p213
      %p215 = scmp.ne.s32.totalorder %s207, %s210
      %p216 = scmp.eq.s32.totalorder %s29, 0
      %p217 = por %p215, %p216
      %p218 = scmp.ne.s32.totalorder %s207, %s210
      %p219 = scmp.eq.s32.totalorder %s34, 3
      %p220 = por %p218, %p219
      %p221 = scmp.ne.s32.totalorder %s210, %s211
      %p222 = scmp.eq.s32.totalorder %s34, 0
      %p223 = por %p221, %p222
      %p224 = scmp.ne.s32.totalorder %s210, %s211
      %p225 = scmp.eq.s32.totalorder %s35, 3
      %p226 = por %p224, %p225
      %p228 = scmp.ne.s32.totalorder %s211, %s227
      %p229 = scmp.eq.s32.totalorder %s35, 0
      %p230 = por %p228, %p229
      %s231 = ssub.s32 %s37, %s44
      %p232 = scmp.eq.s32.totalorder %s231, 0
      %s234 = sadd.s32 %s233, 1
      %s235 = scalar_select %p232, %s233, %s234
      %p238 = pneg %p232
      %p239 = scmp.eq.s32.totalorder %s29, 3
      %p240 = por %p238, %p239
      %p241 = scmp.ne.s32.totalorder %s233, %s236
      %p242 = scmp.eq.s32.totalorder %s29, 0
      %p243 = por %p241, %p242
      %p244 = scmp.ne.s32.totalorder %s233, %s236
      %p245 = scmp.eq.s32.totalorder %s34, 3
      %p246 = por %p244, %p245
      %p247 = scmp.ne.s32.totalorder %s236, %s237
      %p248 = scmp.eq.s32.totalorder %s34, 0
      %p249 = por %p247, %p248
      %p250 = scmp.ne.s32.totalorder %s236, %s237
      %p251 = scmp.eq.s32.totalorder %s35, 3
      %p252 = por %p250, %p251
      %p254 = scmp.ne.s32.totalorder %s237, %s253
      %p255 = scmp.eq.s32.totalorder %s35, 0
      %p256 = por %p254, %p255
      %s257 = ssub.s32 %s37, %s44
      %p258 = scmp.eq.s32.totalorder %s257, 0
      %s260 = sadd.s32 %s259, 1
      %s261 = scalar_select %p258, %s259, %s260
      %p264 = pneg %p258
      %p265 = scmp.eq.s32.totalorder %s29, 3
      %p266 = por %p264, %p265
      %p267 = scmp.ne.s32.totalorder %s259, %s262
      %p268 = scmp.eq.s32.totalorder %s29, 0
      %p269 = por %p267, %p268
      %p270 = scmp.ne.s32.totalorder %s259, %s262
      %p271 = scmp.eq.s32.totalorder %s34, 3
      %p272 = por %p270, %p271
      %p273 = scmp.ne.s32.totalorder %s262, %s263
      %p274 = scmp.eq.s32.totalorder %s34, 0
      %p275 = por %p273, %p274
      %p276 = scmp.ne.s32.totalorder %s262, %s263
      %p277 = scmp.eq.s32.totalorder %s35, 3
      %p278 = por %p276, %p277
      %p280 = scmp.ne.s32.totalorder %s263, %s279
      %p281 = scmp.eq.s32.totalorder %s35, 0
      %p282 = por %p280, %p281
      %s283 = ssub.s32 %s37, %s44
      %p284 = scmp.eq.s32.totalorder %s283, 0
      %s286 = sadd.s32 %s285, 1
      %s287 = scalar_select %p284, %s285, %s286
      %p290 = pneg %p284
      %p291 = scmp.eq.s32.totalorder %s29, 3
      %p292 = por %p290, %p291
      %p293 = scmp.ne.s32.totalorder %s285, %s288
      %p294 = scmp.eq.s32.totalorder %s29, 0
      %p295 = por %p293, %p294
      %p296 = scmp.ne.s32.totalorder %s285, %s288
      %p297 = scmp.eq.s32.totalorder %s34, 3
      %p298 = por %p296, %p297
      %p299 = scmp.ne.s32.totalorder %s288, %s289
      %p300 = scmp.eq.s32.totalorder %s34, 0
      %p301 = por %p299, %p300
      %p302 = scmp.ne.s32.totalorder %s288, %s289
      %p303 = scmp.eq.s32.totalorder %s35, 3
      %p304 = por %p302, %p303
      %p306 = scmp.ne.s32.totalorder %s289, %s305
      %p307 = scmp.eq.s32.totalorder %s35, 0
      %p308 = por %p306, %p307
      %s309 = ssub.s32 %s37, %s44
      %p310 = scmp.eq.s32.totalorder %s309, 0
      %s312 = sadd.s32 %s311, 1
      %s313 = scalar_select %p310, %s311, %s312
      %p316 = pneg %p310
      %p317 = scmp.eq.s32.totalorder %s29, 3
      %p318 = por %p316, %p317
      %p319 = scmp.ne.s32.totalorder %s311, %s314
      %p320 = scmp.eq.s32.totalorder %s29, 0
      %p321 = por %p319, %p320
      %p322 = scmp.ne.s32.totalorder %s311, %s314
      %p323 = scmp.eq.s32.totalorder %s34, 3
      %p324 = por %p322, %p323
      %p325 = scmp.ne.s32.totalorder %s314, %s315
      %p326 = scmp.eq.s32.totalorder %s34, 0
      %p327 = por %p325, %p326
      %p328 = scmp.ne.s32.totalorder %s314, %s315
      %p329 = scmp.eq.s32.totalorder %s35, 3
      %p330 = por %p328, %p329
      %p332 = scmp.ne.s32.totalorder %s315, %s331
      %p333 = scmp.eq.s32.totalorder %s35, 0
      %p334 = por %p332, %p333
      %s335 = ssub.s32 %s37, %s44
      %p336 = scmp.eq.s32.totalorder %s335, 0
      %s338 = sadd.s32 %s337, 1
      %s339 = scalar_select %p336, %s337, %s338
      %p342 = pneg %p336
      %p343 = scmp.eq.s32.totalorder %s29, 3
      %p344 = por %p342, %p343
      %p345 = scmp.ne.s32.totalorder %s337, %s340
      %p346 = scmp.eq.s32.totalorder %s29, 0
      %p347 = por %p345, %p346
      %p348 = scmp.ne.s32.totalorder %s337, %s340
      %p349 = scmp.eq.s32.totalorder %s34, 3
      %p350 = por %p348, %p349
      %p351 = scmp.ne.s32.totalorder %s340, %s341
      %p352 = scmp.eq.s32.totalorder %s34, 0
      %p353 = por %p351, %p352
      %p354 = scmp.ne.s32.totalorder %s340, %s341
      %p355 = scmp.eq.s32.totalorder %s35, 3
      %p356 = por %p354, %p355
      %p358 = scmp.ne.s32.totalorder %s341, %s357
      %p359 = scmp.eq.s32.totalorder %s35, 0
      %p360 = por %p358, %p359
      %s361 = ssub.s32 %s37, %s44
      %p362 = scmp.eq.s32.totalorder %s361, 0
      %s364 = sadd.s32 %s363, 1
      %s365 = scalar_select %p362, %s363, %s364
      %p368 = pneg %p362
      %p369 = scmp.eq.s32.totalorder %s29, 3
      %p370 = por %p368, %p369
      %p371 = scmp.ne.s32.totalorder %s363, %s366
      %p372 = scmp.eq.s32.totalorder %s29, 0
      %p373 = por %p371, %p372
      %p374 = scmp.ne.s32.totalorder %s363, %s366
      %p375 = scmp.eq.s32.totalorder %s34, 3
      %p376 = por %p374, %p375
      %p377 = scmp.ne.s32.totalorder %s366, %s367
      %p378 = scmp.eq.s32.totalorder %s34, 0
      %p379 = por %p377, %p378
      %p380 = scmp.ne.s32.totalorder %s366, %s367
      %p381 = scmp.eq.s32.totalorder %s35, 3
      %p382 = por %p380, %p381
      %p384 = scmp.ne.s32.totalorder %s367, %s383
      %p385 = scmp.eq.s32.totalorder %s35, 0
      %p386 = por %p384, %p385
      %s387 = ssub.s32 %s37, %s44
      %p388 = scmp.eq.s32.totalorder %s387, 0
      %s390 = sadd.s32 %s389, 1
      %s391 = scalar_select %p388, %s389, %s390
      %p394 = pneg %p388
      %p395 = scmp.eq.s32.totalorder %s29, 3
      %p396 = por %p394, %p395
      %p397 = scmp.ne.s32.totalorder %s389, %s392
      %p398 = scmp.eq.s32.totalorder %s29, 0
      %p399 = por %p397, %p398
      %p400 = scmp.ne.s32.totalorder %s389, %s392
      %p401 = scmp.eq.s32.totalorder %s34, 3
      %p402 = por %p400, %p401
      %p403 = scmp.ne.s32.totalorder %s392, %s393
      %p404 = scmp.eq.s32.totalorder %s34, 0
      %p405 = por %p403, %p404
      %p406 = scmp.ne.s32.totalorder %s392, %s393
      %p407 = scmp.eq.s32.totalorder %s35, 3
      %p408 = por %p406, %p407
      %p410 = scmp.ne.s32.totalorder %s393, %s409
      %p411 = scmp.eq.s32.totalorder %s35, 0
      %p412 = por %p410, %p411
      %s413 = ssub.s32 %s36, %s48
      %p414 = scmp.eq.s32.totalorder %s413, 0
      %s416 = sadd.s32 %s415, 1
      %s417 = scalar_select %p414, %s415, %s416
      %p420 = pneg %p414
      %p421 = scmp.eq.s32.totalorder %s29, 3
      %p422 = por %p420, %p421
      %p423 = scmp.ne.s32.totalorder %s415, %s418
      %p424 = scmp.eq.s32.totalorder %s29, 0
      %p425 = por %p423, %p424
      %p426 = scmp.ne.s32.totalorder %s415, %s418
      %p427 = scmp.eq.s32.totalorder %s34, 3
      %p428 = por %p426, %p427
      %p429 = scmp.ne.s32.totalorder %s418, %s419
      %p430 = scmp.eq.s32.totalorder %s34, 0
      %p431 = por %p429, %p430
      %p432 = scmp.ne.s32.totalorder %s418, %s419
      %p433 = scmp.eq.s32.totalorder %s35, 3
      %p434 = por %p432, %p433
      %p436 = scmp.ne.s32.totalorder %s419, %s435
      %p437 = scmp.eq.s32.totalorder %s35, 0
      %p438 = por %p436, %p437
      %p439 = scmp.le.s32.totalorder 1, %s29
      %p440 = scmp.lt.s32.totalorder %s29, 5
      %p441 = pnand %p439, %p440
      %p442 = pneg %p441
      // Predicated region
      $region9: #{tpu_custom_call.1} parent=5 // pred_check
        _
      $region10: #{tpu_custom_call.1} parent=5 // pred_check_branch
        %444 = sbr.rel (%p441) target = $region12
      $region11: #{tpu_custom_call.1} parent=5 // pred_region
        %s445 = ssub.s32 %s29, 1
      $region12: #{tpu_custom_call.1} parent=5 // pred_fallthru
        _
      %p446 = scmp.lt.s32.totalorder %s29, 4
      // Predicated region
      $region13: #{tpu_custom_call.1} parent=5 // pred_check
        %p447 = pneg %p446
      $region14: #{tpu_custom_call.1} parent=5 // pred_check_branch
        %449 = sbr.rel (%p447) target = $region16
      $region15: #{tpu_custom_call.1} parent=5 // pred_region
        // Predicated region
        $region17: #{tpu_custom_call.1} parent=15 // pred_check
          %p450 = pneg %p61
        $region18: #{tpu_custom_call.1} parent=15 // pred_check_branch
          %452 = sbr.rel (%p450) target = $region20
        $region19: #{tpu_custom_call.1} parent=15 // pred_region
          %s453 = sand.u32 %s51, 1
          %s454 = scalar_lea.sflag [#allocation3], %s453
          %s455 = sand.u32 %s51, 1
          %s456 = smul.addr %s455, 8
          %s457 = scalar_lea.vmem [#allocation2], %s456
          %s459 = ssub.s32 128, 128
          %460 = vsyncadd %s454, %s459
          %s461 = smul.addr %s36, 128
          %s462 = scalar_lea.hbm %s0, %s461
          %s464 = sshll.u32 %s457, 4
          %s465 = int_to_ptr.vmem [resolvable:$true] %s464
          %467 = dma.hbm_to_vmem [thread:$0]  %s462, 128, %s465, %s454
        $region20: #{tpu_custom_call.1} parent=15 // pred_fallthru
          _
        // Predicated region
        $region21: #{tpu_custom_call.1} parent=15 // pred_check
          %p468 = pneg %p87
        $region22: #{tpu_custom_call.1} parent=15 // pred_check_branch
          %470 = sbr.rel (%p468) target = $region24
        $region23: #{tpu_custom_call.1} parent=15 // pred_region
          %s471 = sand.u32 %s77, 1
          %s472 = scalar_lea.sflag [#allocation6], %s471
          %s473 = sand.u32 %s77, 1
          %s474 = smul.addr %s473, 8
          %s475 = scalar_lea.vmem [#allocation5], %s474
          %s477 = ssub.s32 128, 128
          %478 = vsyncadd %s472, %s477
          %s479 = smul.addr %s36, 128
          %s480 = scalar_lea.hbm %s1, %s479
          %s482 = sshll.u32 %s475, 4
          %s483 = int_to_ptr.vmem [resolvable:$true] %s482
          %485 = dma.hbm_to_vmem [thread:$0]  %s480, 128, %s483, %s472
        $region24: #{tpu_custom_call.1} parent=15 // pred_fallthru
          _
        // Predicated region
        $region25: #{tpu_custom_call.1} parent=15 // pred_check
          %p486 = pneg %p113
        $region26: #{tpu_custom_call.1} parent=15 // pred_check_branch
          %488 = sbr.rel (%p486) target = $region28
        $region27: #{tpu_custom_call.1} parent=15 // pred_region
          %p489 = scmp.lt.s32.totalorder %s37, 1
          %s490 = scalar_select %p489, %s37, 1
          %s491 = smul.addr %s490, 4
          %s492 = smul.addr %s491, 8
          %s493 = scalar_lea.vmem %s2, %s492
        $region28: #{tpu_custom_call.1} parent=15 // pred_fallthru
          _
        // Predicated region
        $region29: #{tpu_custom_call.1} parent=15 // pred_check
          %p494 = pneg %p139
        $region30: #{tpu_custom_call.1} parent=15 // pred_check_branch
          %496 = sbr.rel (%p494) target = $region32
        $region31: #{tpu_custom_call.1} parent=15 // pred_region
          %p497 = scmp.lt.s32.totalorder %s37, 1
          %s498 = scalar_select %p497, %s37, 1
          %s499 = scalar_lea.vmem %s3, %s498
        $region32: #{tpu_custom_call.1} parent=15 // pred_fallthru
          _
        // Predicated region
        $region33: #{tpu_custom_call.1} parent=15 // pred_check
          %p500 = pneg %p165
        $region34: #{tpu_custom_call.1} parent=15 // pred_check_branch
          %502 = sbr.rel (%p500) target = $region36
        $region35: #{tpu_custom_call.1} parent=15 // pred_region
          %p503 = scmp.lt.s32.totalorder %s37, 1
          %s504 = scalar_select %p503, %s37, 1
          %s505 = smul.addr %s504, 4
          %s506 = smul.addr %s505, 8
          %s507 = scalar_lea.vmem %s4, %s506
        $region36: #{tpu_custom_call.1} parent=15 // pred_fallthru
          _
        // Predicated region
        $region37: #{tpu_custom_call.1} parent=15 // pred_check
          %p508 = pneg %p191
        $region38: #{tpu_custom_call.1} parent=15 // pred_check_branch
          %510 = sbr.rel (%p508) target = $region40
        $region39: #{tpu_custom_call.1} parent=15 // pred_region
          %p511 = scmp.lt.s32.totalorder %s37, 1
          %s512 = scalar_select %p511, %s37, 1
          %s513 = scalar_lea.vmem %s5, %s512
        $region40: #{tpu_custom_call.1} parent=15 // pred_fallthru
          _
        // Predicated region
        $region41: #{tpu_custom_call.1} parent=15 // pred_check
          %p514 = pneg %p217
        $region42: #{tpu_custom_call.1} parent=15 // pred_check_branch
          %516 = sbr.rel (%p514) target = $region44
        $region43: #{tpu_custom_call.1} parent=15 // pred_region
          %p517 = scmp.lt.s32.totalorder %s37, 1
          %s518 = scalar_select %p517, %s37, 1
          %s519 = scalar_lea.vmem %s6, %s518
        $region44: #{tpu_custom_call.1} parent=15 // pred_fallthru
          _
        // Predicated region
        $region45: #{tpu_custom_call.1} parent=15 // pred_check
          %p520 = pneg %p243
        $region46: #{tpu_custom_call.1} parent=15 // pred_check_branch
          %522 = sbr.rel (%p520) target = $region48
        $region47: #{tpu_custom_call.1} parent=15 // pred_region
          %p523 = scmp.lt.s32.totalorder %s37, 1
          %s524 = scalar_select %p523, %s37, 1
          %s525 = scalar_lea.vmem %s7, %s524
        $region48: #{tpu_custom_call.1} parent=15 // pred_fallthru
          _
        // Predicated region
        $region49: #{tpu_custom_call.1} parent=15 // pred_check
          %p526 = pneg %p269
        $region50: #{tpu_custom_call.1} parent=15 // pred_check_branch
          %528 = sbr.rel (%p526) target = $region52
        $region51: #{tpu_custom_call.1} parent=15 // pred_region
          %p529 = scmp.lt.s32.totalorder %s37, 1
          %s530 = scalar_select %p529, %s37, 1
          %s531 = smul.addr %s530, 4
          %s532 = smul.addr %s531, 8
          %s533 = scalar_lea.vmem %s8, %s532
        $region52: #{tpu_custom_call.1} parent=15 // pred_fallthru
          _
        // Predicated region
        $region53: #{tpu_custom_call.1} parent=15 // pred_check
          %p534 = pneg %p295
        $region54: #{tpu_custom_call.1} parent=15 // pred_check_branch
          %536 = sbr.rel (%p534) target = $region56
        $region55: #{tpu_custom_call.1} parent=15 // pred_region
          %p537 = scmp.lt.s32.totalorder %s37, 1
          %s538 = scalar_select %p537, %s37, 1
          %s539 = scalar_lea.vmem %s9, %s538
        $region56: #{tpu_custom_call.1} parent=15 // pred_fallthru
          _
        // Predicated region
        $region57: #{tpu_custom_call.1} parent=15 // pred_check
          %p540 = pneg %p321
        $region58: #{tpu_custom_call.1} parent=15 // pred_check_branch
          %542 = sbr.rel (%p540) target = $region60
        $region59: #{tpu_custom_call.1} parent=15 // pred_region
          %p543 = scmp.lt.s32.totalorder %s37, 1
          %s544 = scalar_select %p543, %s37, 1
          %s545 = smul.addr %s544, 8
          %s546 = smul.addr %s545, 8
          %s547 = scalar_lea.vmem %s10, %s546
        $region60: #{tpu_custom_call.1} parent=15 // pred_fallthru
          _
        // Predicated region
        $region61: #{tpu_custom_call.1} parent=15 // pred_check
          %p548 = pneg %p347
        $region62: #{tpu_custom_call.1} parent=15 // pred_check_branch
          %550 = sbr.rel (%p548) target = $region64
        $region63: #{tpu_custom_call.1} parent=15 // pred_region
          %p551 = scmp.lt.s32.totalorder %s37, 1
          %s552 = scalar_select %p551, %s37, 1
          %s553 = scalar_lea.vmem %s11, %s552
        $region64: #{tpu_custom_call.1} parent=15 // pred_fallthru
          _
        // Predicated region
        $region65: #{tpu_custom_call.1} parent=15 // pred_check
          %p554 = pneg %p373
        $region66: #{tpu_custom_call.1} parent=15 // pred_check_branch
          %556 = sbr.rel (%p554) target = $region68
        $region67: #{tpu_custom_call.1} parent=15 // pred_region
          %p557 = scmp.lt.s32.totalorder %s37, 1
          %s558 = scalar_select %p557, %s37, 1
          %s559 = scalar_lea.vmem %s12, %s558
        $region68: #{tpu_custom_call.1} parent=15 // pred_fallthru
          _
        // Predicated region
        $region69: #{tpu_custom_call.1} parent=15 // pred_check
          %p560 = pneg %p399
        $region70: #{tpu_custom_call.1} parent=15 // pred_check_branch
          %562 = sbr.rel (%p560) target = $region72
        $region71: #{tpu_custom_call.1} parent=15 // pred_region
          %p563 = scmp.lt.s32.totalorder %s37, 1
          %s564 = scalar_select %p563, %s37, 1
          %s565 = scalar_lea.vmem %s13, %s564
        $region72: #{tpu_custom_call.1} parent=15 // pred_fallthru
          _
      $region16: #{tpu_custom_call.1} parent=5 // pred_fallthru
        _
      %p566 = scmp.le.s32.totalorder 1, %s29
      %p567 = scmp.lt.s32.totalorder %s29, 5
      %p568 = pnand %p566, %p567
      %p569 = pneg %p568
      // Predicated region
      $region73: #{tpu_custom_call.1} parent=5 // pred_check
        _
      $region74: #{tpu_custom_call.1} parent=5 // pred_check_branch
        %571 = sbr.rel (%p568) target = $region76
      $region75: #{tpu_custom_call.1} parent=5 // pred_region
        %s572 = ssub.s32 %s29, 1
        %s573 = sand.u32 %s54, 1
        %s574 = scalar_lea.sflag [#allocation3], %s573
        %s575 = sand.u32 %s54, 1
        %s576 = smul.addr %s575, 8
        %s577 = scalar_lea.vmem [#allocation2], %s576
        // Predicated region
        $region77: #{tpu_custom_call.1} parent=75 // pred_check
          %p578 = pneg %p67
        $region78: #{tpu_custom_call.1} parent=75 // pred_check_branch
          %580 = sbr.rel (%p578) target = $region80
        $region79: #{tpu_custom_call.1} parent=75 // pred_region
          %581 = dma.done %s574, 128
        $region80: #{tpu_custom_call.1} parent=75 // pred_fallthru
          _
        %s582 = sand.u32 %s80, 1
        %s583 = scalar_lea.sflag [#allocation6], %s582
        %s584 = sand.u32 %s80, 1
        %s585 = smul.addr %s584, 8
        %s586 = scalar_lea.vmem [#allocation5], %s585
        // Predicated region
        $region81: #{tpu_custom_call.1} parent=75 // pred_check
          %p587 = pneg %p93
        $region82: #{tpu_custom_call.1} parent=75 // pred_check_branch
          %589 = sbr.rel (%p587) target = $region84
        $region83: #{tpu_custom_call.1} parent=75 // pred_region
          %590 = dma.done %s583, 128
        $region84: #{tpu_custom_call.1} parent=75 // pred_fallthru
          _
        %s591 = sand.u32 %s54, 1
        %s592 = scalar_lea.sflag [#allocation3], %s591
        %s593 = sand.u32 %s54, 1
        %s594 = smul.addr %s593, 8
        %s595 = scalar_lea.vmem [#allocation2], %s594
        %p596 = pneg %p67
        %p597 = pneg %p64
        %s598 = sand.u32 %s80, 1
        %s599 = scalar_lea.sflag [#allocation6], %s598
        %s600 = sand.u32 %s80, 1
        %s601 = smul.addr %s600, 8
        %s602 = scalar_lea.vmem [#allocation5], %s601
        %p603 = pneg %p93
        %p604 = pneg %p90
        %p605 = scmp.lt.s32.totalorder %s39, 1
        %s606 = scalar_select %p605, %s39, 1
        %s607 = smul.addr %s606, 4
        %s608 = smul.addr %s607, 8
        %s609 = scalar_lea.vmem %s2, %s608
        %p610 = pneg %p119
        %p611 = pneg %p116
        %p612 = scmp.lt.s32.totalorder %s39, 1
        %s613 = scalar_select %p612, %s39, 1
        %s614 = scalar_lea.vmem %s3, %s613
        %p615 = pneg %p145
        %p616 = pneg %p142
        %p617 = scmp.lt.s32.totalorder %s39, 1
        %s618 = scalar_select %p617, %s39, 1
        %s619 = smul.addr %s618, 4
        %s620 = smul.addr %s619, 8
        %s621 = scalar_lea.vmem %s4, %s620
        %p622 = pneg %p171
        %p623 = pneg %p168
        %p624 = scmp.lt.s32.totalorder %s39, 1
        %s625 = scalar_select %p624, %s39, 1
        %s626 = scalar_lea.vmem %s5, %s625
        %p627 = pneg %p197
        %p628 = pneg %p194
        %p629 = scmp.lt.s32.totalorder %s39, 1
        %s630 = scalar_select %p629, %s39, 1
        %s631 = scalar_lea.vmem %s6, %s630
        %p632 = pneg %p223
        %p633 = pneg %p220
        %p634 = scmp.lt.s32.totalorder %s39, 1
        %s635 = scalar_select %p634, %s39, 1
        %s636 = scalar_lea.vmem %s7, %s635
        %p637 = pneg %p249
        %p638 = pneg %p246
        %p639 = scmp.lt.s32.totalorder %s39, 1
        %s640 = scalar_select %p639, %s39, 1
        %s641 = smul.addr %s640, 4
        %s642 = smul.addr %s641, 8
        %s643 = scalar_lea.vmem %s8, %s642
        %p644 = pneg %p275
        %p645 = pneg %p272
        %p646 = scmp.lt.s32.totalorder %s39, 1
        %s647 = scalar_select %p646, %s39, 1
        %s648 = scalar_lea.vmem %s9, %s647
        %p649 = pneg %p301
        %p650 = pneg %p298
        %p651 = scmp.lt.s32.totalorder %s39, 1
        %s652 = scalar_select %p651, %s39, 1
        %s653 = smul.addr %s652, 8
        %s654 = smul.addr %s653, 8
        %s655 = scalar_lea.vmem %s10, %s654
        %p656 = pneg %p327
        %p657 = pneg %p324
        %p658 = scmp.lt.s32.totalorder %s39, 1
        %s659 = scalar_select %p658, %s39, 1
        %s660 = scalar_lea.vmem %s11, %s659
        %p661 = pneg %p353
        %p662 = pneg %p350
        %p663 = scmp.lt.s32.totalorder %s39, 1
        %s664 = scalar_select %p663, %s39, 1
        %s665 = scalar_lea.vmem %s12, %s664
        %p666 = pneg %p379
        %p667 = pneg %p376
        %p668 = scmp.lt.s32.totalorder %s39, 1
        %s669 = scalar_select %p668, %s39, 1
        %s670 = scalar_lea.vmem %s13, %s669
        %p671 = pneg %p405
        %p672 = pneg %p402
        %p673 = pneg %p431
        %p674 = pneg %p428
        %s675 = sand.u32 %s418, 1
        %s676 = scalar_lea.sflag [#allocation4], %s675
        %s677 = sand.u32 %s418, 1
        %s678 = smul.addr %s677, 8
        %s679 = scalar_lea.vmem [#allocation7], %s678
        %p680 = scmp.lt.s32.totalorder %s39, 1
        %s681 = scalar_select %p680, %s39, 1
        %s682 = smul.addr %s681, 4
        %s683 = smul.addr %s682, 8
        %s684 = scalar_lea.vmem %s2, %s683
        %p685 = scmp.lt.s32.totalorder %s39, 1
        %s686 = scalar_select %p685, %s39, 1
        %s687 = scalar_lea.vmem %s3, %s686
        %p688 = scmp.lt.s32.totalorder %s39, 1
        %s689 = scalar_select %p688, %s39, 1
        %s690 = smul.addr %s689, 4
        %s691 = smul.addr %s690, 8
        %s692 = scalar_lea.vmem %s4, %s691
        %p693 = scmp.lt.s32.totalorder %s39, 1
        %s694 = scalar_select %p693, %s39, 1
        %s695 = scalar_lea.vmem %s5, %s694
        %p696 = scmp.lt.s32.totalorder %s39, 1
        %s697 = scalar_select %p696, %s39, 1
        %s698 = scalar_lea.vmem %s6, %s697
        %p699 = scmp.lt.s32.totalorder %s39, 1
        %s700 = scalar_select %p699, %s39, 1
        %s701 = scalar_lea.vmem %s7, %s700
        %p702 = scmp.lt.s32.totalorder %s39, 1
        %s703 = scalar_select %p702, %s39, 1
        %s704 = smul.addr %s703, 4
        %s705 = smul.addr %s704, 8
        %s706 = scalar_lea.vmem %s8, %s705
        %p707 = scmp.lt.s32.totalorder %s39, 1
        %s708 = scalar_select %p707, %s39, 1
        %s709 = scalar_lea.vmem %s9, %s708
        %p710 = scmp.lt.s32.totalorder %s39, 1
        %s711 = scalar_select %p710, %s39, 1
        %s712 = smul.addr %s711, 8
        %s713 = smul.addr %s712, 8
        %s714 = scalar_lea.vmem %s10, %s713
        %p715 = scmp.lt.s32.totalorder %s39, 1
        %s716 = scalar_select %p715, %s39, 1
        %s717 = scalar_lea.vmem %s11, %s716
        %p718 = scmp.lt.s32.totalorder %s39, 1
        %s719 = scalar_select %p718, %s39, 1
        %s720 = scalar_lea.vmem %s12, %s719
        %p721 = scmp.lt.s32.totalorder %s39, 1
        %s722 = scalar_select %p721, %s39, 1
        %s723 = scalar_lea.vmem %s13, %s722
        %p724 = scmp.eq.s32.totalorder %s39, 0
        // Predicated region
        $region85: #{tpu_custom_call.1} parent=75 // pred_check
          %p725 = pneg %p724
        $region86: #{tpu_custom_call.1} parent=75 // pred_check_branch
          %727 = sbr.rel (%p725) target = $region88
        $region87: #{tpu_custom_call.1} parent=75 // pred_region
          %v728 = vld [vmem:[%s577] sm:$0xff]
          %vm729 = vcmask 261120
          %730 = vst.msk [vmem:[%s679] sm:$0xff] %vm729, %v728
        $region88: #{tpu_custom_call.1} parent=75 // pred_fallthru
          _
        %v731 = vld [vmem:[%s679] sm:$0xff]
        %v732 = vld [vmem:[%s684] sm:$0xff]
        %v733 = vld [vmem:[%s684 + $0x8] sm:$0xff]
        %v734 = vld [vmem:[%s684 + $0x10] sm:$0xff]
        %v735 = vld [vmem:[%s684 + $0x18] sm:$0xff]
        %v736 = vld [vmem:[%s687] sm:$0x1]
        %v738 = vlaneseq
        %v739 = vshrl.u32 %v738, 7
        %v740 = vsub.s32 0, %v739
        %v741 = vrot.slane %v736, %v740
        %vm743 = vcmask 261120
        %v745 = vsel %vm743, %v731, 0
        %747 = vmatprep.subr.mxu0 0.0
        %748 = vmatpush1.msra.mxu0 0.0
        %749 = vmatprep.subr.mxu0 0.0
        %750 = vmatpush1.msra.mxu0 0.0
        %751 = vmatprep.subr.mxu0 0.0
        %752 = vmatpush1.msra.mxu0 0.0
        %753 = vmatprep.subr.mxu0 0.0
        %754 = vmatpush1.msra.mxu0 0.0
        %755 = vmatprep.subr.mxu0 0.0
        %756 = vmatpush1.msra.mxu0 0.0
        %757 = vmatprep.subr.mxu0 0.0
        %758 = vmatpush1.msra.mxu0 0.0
        %759 = vmatprep.subr.mxu0 0.0
        %760 = vmatpush1.msra.mxu0 0.0
        %761 = vmatprep.subr.mxu0 0.0
        %762 = vmatpush1.msra.mxu0 0.0
        %763 = vmatprep.subr.mxu0 0.0
        %764 = vmatpush1.msra.mxu0 0.0
        %765 = vmatprep.subr.mxu0 0.0
        %766 = vmatpush1.msra.mxu0 0.0
        %767 = vmatprep.subr.mxu0 0.0
        %768 = vmatpush1.msra.mxu0 0.0
        %769 = vmatprep.subr.mxu0 0.0
        %770 = vmatpush1.msra.mxu0 0.0
        %771 = vmatprep.subr.mxu0 0.0
        %772 = vmatpush1.msra.mxu0 %v735
        %773 = vmatprep.subr.mxu0 0.0
        %774 = vmatpush1.msra.mxu0 %v734
        %775 = vmatprep.subr.mxu0 0.0
        %776 = vmatpush1.msra.mxu0 %v733
        %777 = vmatprep.subr.mxu0 0.0
        %778 = vmatpush1.msra.mxu0 %v732
        %779 = vmatprep.subr.mxu0 0.0
        %780 = vmatpush2.msra.mxu0 0.0
        %781 = vmatprep.subr.mxu0 0.0
        %782 = vmatpush2.msra.mxu0 0.0
        %783 = vmatprep.subr.mxu0 0.0
        %784 = vmatpush2.msra.mxu0 0.0
        %785 = vmatprep.subr.mxu0 0.0
        %786 = vmatpush2.msra.mxu0 0.0
        %787 = vmatprep.subr.mxu0 0.0
        %788 = vmatpush2.msra.mxu0 0.0
        %789 = vmatprep.subr.mxu0 0.0
        %790 = vmatpush2.msra.mxu0 0.0
        %791 = vmatprep.subr.mxu0 0.0
        %792 = vmatpush2.msra.mxu0 0.0
        %793 = vmatprep.subr.mxu0 0.0
        %794 = vmatpush2.msra.mxu0 0.0
        %795 = vmatprep.subr.mxu0 0.0
        %796 = vmatpush2.msra.mxu0 0.0
        %797 = vmatprep.subr.mxu0 0.0
        %798 = vmatpush2.msra.mxu0 0.0
        %799 = vmatprep.subr.mxu0 0.0
        %800 = vmatpush2.msra.mxu0 0.0
        %801 = vmatprep.subr.mxu0 0.0
        %802 = vmatpush2.msra.mxu0 0.0
        %803 = vmatprep.subr.mxu0 0.0
        %804 = vmatpush2.msra.mxu0 0.0
        %805 = vmatprep.subr.mxu0 0.0
        %806 = vmatpush2.msra.mxu0 0.0
        %807 = vmatprep.subr.mxu0 0.0
        %808 = vmatpush2.msra.mxu0 0.0
        %809 = vmatprep.subr.mxu0 0.0
        %810 = vmatpush2.msra.mxu0 0.0
        %811 = vmatprep.mubr.f32.mxu0 0.0
        %812 = vmatmul.mubr.f32.gmra.mxu0 %v745
        %v813 = vpop.f32.mrf.mxu0
        %v814 = vadd.f32 %v741, %v813
        %v815 = vpop.f32.mrf.mxu0
        %816 = vdwg.mxu0
        %818 = vrot.lane.b32.xlu0 %v814, 120
        %v819 = vpop.permute.xlu0 %818
        %821 = vrot.lane.b32.xlu0 %v814, 112
        %v822 = vpop.permute.xlu0 %821
        %824 = vrot.lane.b32.xlu0 %v814, 104
        %v825 = vpop.permute.xlu0 %824
        %v827 = vcombine.low %v814, %v822
        %v828 = vcombine.high %v814, %v822
        %v830 = vunpack.c.l.s4 1983009808
        %v831 = vunpack.c.0.s8 %v830
        %v832 = vlaneseq
        %v833 = vshrl.u32 %v832, 7
        %v834 = vsub.s32 %v831, %v833
        %v835 = vrot.slane %v827, %v834
        %v837 = vunpack.c.l.s4 1983009808
        %v838 = vunpack.c.0.s8 %v837
        %v839 = vlaneseq
        %v840 = vshrl.u32 %v839, 7
        %v841 = vsub.s32 %v838, %v840
        %v842 = vrot.slane %v828, %v841
        %v843 = vcombine.low %v819, %v825
        %v844 = vcombine.high %v819, %v825
        %v846 = vunpack.c.l.s4 1983009808
        %v847 = vunpack.c.0.s8 %v846
        %v848 = vlaneseq
        %v849 = vshrl.u32 %v848, 7
        %v850 = vsub.s32 %v847, %v849
        %v851 = vrot.slane %v843, %v850
        %v853 = vunpack.c.l.s4 1983009808
        %v854 = vunpack.c.0.s8 %v853
        %v855 = vlaneseq
        %v856 = vshrl.u32 %v855, 7
        %v857 = vsub.s32 %v854, %v856
        %v858 = vrot.slane %v844, %v857
        %v859 = vcombine.low %v835, %v851
        %v860 = vcombine.high %v835, %v851
        %v862 = vunpack.c.l.s4 1934713408
        %v863 = vunpack.c.0.s8 %v862
        %v864 = vlaneseq
        %v865 = vshrl.u32 %v864, 7
        %v866 = vsub.s32 %v863, %v865
        %v867 = vrot.slane %v859, %v866
        %v869 = vunpack.c.l.s4 1934713408
        %v870 = vunpack.c.0.s8 %v869
        %v871 = vlaneseq
        %v872 = vshrl.u32 %v871, 7
        %v873 = vsub.s32 %v870, %v872
        %v874 = vrot.slane %v860, %v873
        %v875 = vcombine.low %v842, %v858
        %v876 = vcombine.high %v842, %v858
        %v878 = vunpack.c.l.s4 1934713408
        %v879 = vunpack.c.0.s8 %v878
        %v880 = vlaneseq
        %v881 = vshrl.u32 %v880, 7
        %v882 = vsub.s32 %v879, %v881
        %v883 = vrot.slane %v875, %v882
        %v885 = vunpack.c.l.s4 1934713408
        %v886 = vunpack.c.0.s8 %v885
        %v887 = vlaneseq
        %v888 = vshrl.u32 %v887, 7
        %v889 = vsub.s32 %v886, %v888
        %v890 = vrot.slane %v876, %v889
        %v891 = vcombine.high %v867, 0.0
        %v892 = vcombine.high %v874, 0.0
        %v893 = vcombine.high %v883, 0.0
        %v894 = vcombine.high %v890, 0.0
        %v895 = vcombine.low %v867, %v874
        %v897 = vunpack.c.l.s4 1983009808
        %v898 = vunpack.c.0.s8 %v897
        %v899 = vlaneseq
        %v900 = vshrl.u32 %v899, 7
        %v901 = vsub.s32 %v898, %v900
        %v902 = vrot.slane %v895, %v901
        %v903 = vcombine.low %v891, %v892
        %v905 = vunpack.c.l.s4 1983009808
        %v906 = vunpack.c.0.s8 %v905
        %v907 = vlaneseq
        %v908 = vshrl.u32 %v907, 7
        %v909 = vsub.s32 %v906, %v908
        %v910 = vrot.slane %v903, %v909
        %v911 = vcombine.low %v883, %v890
        %v913 = vunpack.c.l.s4 1983009808
        %v914 = vunpack.c.0.s8 %v913
        %v915 = vlaneseq
        %v916 = vshrl.u32 %v915, 7
        %v917 = vsub.s32 %v914, %v916
        %v918 = vrot.slane %v911, %v917
        %v919 = vcombine.low %v893, %v894
        %v921 = vunpack.c.l.s4 1983009808
        %v922 = vunpack.c.0.s8 %v921
        %v923 = vlaneseq
        %v924 = vshrl.u32 %v923, 7
        %v925 = vsub.s32 %v922, %v924
        %v926 = vrot.slane %v919, %v925
        %v927 = vcombine.low %v902, %v910
        %v928 = vcombine.high %v902, %v910
        %v930 = vunpack.c.l.s4 1934713408
        %v931 = vunpack.c.0.s8 %v930
        %v932 = vlaneseq
        %v933 = vshrl.u32 %v932, 7
        %v934 = vsub.s32 %v931, %v933
        %v935 = vrot.slane %v927, %v934
        %v937 = vunpack.c.l.s4 1934713408
        %v938 = vunpack.c.0.s8 %v937
        %v939 = vlaneseq
        %v940 = vshrl.u32 %v939, 7
        %v941 = vsub.s32 %v938, %v940
        %v942 = vrot.slane %v928, %v941
        %v943 = vcombine.low %v918, %v926
        %v944 = vcombine.high %v918, %v926
        %v946 = vunpack.c.l.s4 1934713408
        %v947 = vunpack.c.0.s8 %v946
        %v948 = vlaneseq
        %v949 = vshrl.u32 %v948, 7
        %v950 = vsub.s32 %v947, %v949
        %v951 = vrot.slane %v943, %v950
        %v953 = vunpack.c.l.s4 1934713408
        %v954 = vunpack.c.0.s8 %v953
        %v955 = vlaneseq
        %v956 = vshrl.u32 %v955, 7
        %v957 = vsub.s32 %v954, %v956
        %v958 = vrot.slane %v944, %v957
        %v959 = vcombine.low %v935, %v951
        %v960 = vcombine.high %v935, %v951
        %v961 = vcombine.low %v942, %v958
        %v962 = vcombine.high %v942, %v958
        %963 = vrot.lane.b32.xlu0 %v814, 96
        %v964 = vpop.permute.xlu0 %963
        %965 = vrot.lane.b32.xlu0 %v819, 96
        %v966 = vpop.permute.xlu0 %965
        %967 = vrot.lane.b32.xlu0 %v822, 96
        %v968 = vpop.permute.xlu0 %967
        %969 = vrot.lane.b32.xlu0 %v825, 96
        %v970 = vpop.permute.xlu0 %969
        %v975 = vcombine.low %v964, %v968
        %v976 = vcombine.high %v964, %v968
        %v978 = vunpack.c.l.s4 1983009808
        %v979 = vunpack.c.0.s8 %v978
        %v980 = vlaneseq
        %v981 = vshrl.u32 %v980, 7
        %v982 = vsub.s32 %v979, %v981
        %v983 = vrot.slane %v975, %v982
        %v985 = vunpack.c.l.s4 1983009808
        %v986 = vunpack.c.0.s8 %v985
        %v987 = vlaneseq
        %v988 = vshrl.u32 %v987, 7
        %v989 = vsub.s32 %v986, %v988
        %v990 = vrot.slane %v976, %v989
        %v991 = vcombine.low %v966, %v970
        %v992 = vcombine.high %v966, %v970
        %v994 = vunpack.c.l.s4 1983009808
        %v995 = vunpack.c.0.s8 %v994
        %v996 = vlaneseq
        %v997 = vshrl.u32 %v996, 7
        %v998 = vsub.s32 %v995, %v997
        %v999 = vrot.slane %v991, %v998
        %v1001 = vunpack.c.l.s4 1983009808
        %v1002 = vunpack.c.0.s8 %v1001
        %v1003 = vlaneseq
        %v1004 = vshrl.u32 %v1003, 7
        %v1005 = vsub.s32 %v1002, %v1004
        %v1006 = vrot.slane %v992, %v1005
        %v1007 = vcombine.low %v983, %v999
        %v1008 = vcombine.high %v983, %v999
        %v1010 = vunpack.c.l.s4 1934713408
        %v1011 = vunpack.c.0.s8 %v1010
        %v1012 = vlaneseq
        %v1013 = vshrl.u32 %v1012, 7
        %v1014 = vsub.s32 %v1011, %v1013
        %v1015 = vrot.slane %v1007, %v1014
        %v1017 = vunpack.c.l.s4 1934713408
        %v1018 = vunpack.c.0.s8 %v1017
        %v1019 = vlaneseq
        %v1020 = vshrl.u32 %v1019, 7
        %v1021 = vsub.s32 %v1018, %v1020
        %v1022 = vrot.slane %v1008, %v1021
        %v1023 = vcombine.low %v990, %v1006
        %v1024 = vcombine.high %v990, %v1006
        %v1026 = vunpack.c.l.s4 1934713408
        %v1027 = vunpack.c.0.s8 %v1026
        %v1028 = vlaneseq
        %v1029 = vshrl.u32 %v1028, 7
        %v1030 = vsub.s32 %v1027, %v1029
        %v1031 = vrot.slane %v1023, %v1030
        %v1033 = vunpack.c.l.s4 1934713408
        %v1034 = vunpack.c.0.s8 %v1033
        %v1035 = vlaneseq
        %v1036 = vshrl.u32 %v1035, 7
        %v1037 = vsub.s32 %v1034, %v1036
        %v1038 = vrot.slane %v1024, %v1037
        %v1039 = vcombine.high %v1015, 0.0
        %v1040 = vcombine.high %v1022, 0.0
        %v1041 = vcombine.high %v1031, 0.0
        %v1042 = vcombine.high %v1038, 0.0
        %v1043 = vcombine.low %v1015, %v1022
        %v1045 = vunpack.c.l.s4 1983009808
        %v1046 = vunpack.c.0.s8 %v1045
        %v1047 = vlaneseq
        %v1048 = vshrl.u32 %v1047, 7
        %v1049 = vsub.s32 %v1046, %v1048
        %v1050 = vrot.slane %v1043, %v1049
        %v1051 = vcombine.low %v1039, %v1040
        %v1053 = vunpack.c.l.s4 1983009808
        %v1054 = vunpack.c.0.s8 %v1053
        %v1055 = vlaneseq
        %v1056 = vshrl.u32 %v1055, 7
        %v1057 = vsub.s32 %v1054, %v1056
        %v1058 = vrot.slane %v1051, %v1057
        %v1059 = vcombine.low %v1031, %v1038
        %v1061 = vunpack.c.l.s4 1983009808
        %v1062 = vunpack.c.0.s8 %v1061
        %v1063 = vlaneseq
        %v1064 = vshrl.u32 %v1063, 7
        %v1065 = vsub.s32 %v1062, %v1064
        %v1066 = vrot.slane %v1059, %v1065
        %v1067 = vcombine.low %v1041, %v1042
        %v1069 = vunpack.c.l.s4 1983009808
        %v1070 = vunpack.c.0.s8 %v1069
        %v1071 = vlaneseq
        %v1072 = vshrl.u32 %v1071, 7
        %v1073 = vsub.s32 %v1070, %v1072
        %v1074 = vrot.slane %v1067, %v1073
        %v1075 = vcombine.low %v1050, %v1058
        %v1076 = vcombine.high %v1050, %v1058
        %v1078 = vunpack.c.l.s4 1934713408
        %v1079 = vunpack.c.0.s8 %v1078
        %v1080 = vlaneseq
        %v1081 = vshrl.u32 %v1080, 7
        %v1082 = vsub.s32 %v1079, %v1081
        %v1083 = vrot.slane %v1075, %v1082
        %v1085 = vunpack.c.l.s4 1934713408
        %v1086 = vunpack.c.0.s8 %v1085
        %v1087 = vlaneseq
        %v1088 = vshrl.u32 %v1087, 7
        %v1089 = vsub.s32 %v1086, %v1088
        %v1090 = vrot.slane %v1076, %v1089
        %v1091 = vcombine.low %v1066, %v1074
        %v1092 = vcombine.high %v1066, %v1074
        %v1094 = vunpack.c.l.s4 1934713408
        %v1095 = vunpack.c.0.s8 %v1094
        %v1096 = vlaneseq
        %v1097 = vshrl.u32 %v1096, 7
        %v1098 = vsub.s32 %v1095, %v1097
        %v1099 = vrot.slane %v1091, %v1098
        %v1101 = vunpack.c.l.s4 1934713408
        %v1102 = vunpack.c.0.s8 %v1101
        %v1103 = vlaneseq
        %v1104 = vshrl.u32 %v1103, 7
        %v1105 = vsub.s32 %v1102, %v1104
        %v1106 = vrot.slane %v1092, %v1105
        %v1107 = vcombine.low %v1083, %v1099
        %v1108 = vcombine.high %v1083, %v1099
        %v1109 = vcombine.low %v1090, %v1106
        %v1110 = vcombine.high %v1090, %v1106
        %1111 = vrot.lane.b32.xlu0 %v814, 64
        %v1112 = vpop.permute.xlu0 %1111
        %1113 = vrot.lane.b32.xlu0 %v819, 64
        %v1114 = vpop.permute.xlu0 %1113
        %1115 = vrot.lane.b32.xlu0 %v822, 64
        %v1116 = vpop.permute.xlu0 %1115
        %1117 = vrot.lane.b32.xlu0 %v825, 64
        %v1118 = vpop.permute.xlu0 %1117
        %v1123 = vcombine.low %v1112, %v1116
        %v1124 = vcombine.high %v1112, %v1116
        %v1126 = vunpack.c.l.s4 1983009808
        %v1127 = vunpack.c.0.s8 %v1126
        %v1128 = vlaneseq
        %v1129 = vshrl.u32 %v1128, 7
        %v1130 = vsub.s32 %v1127, %v1129
        %v1131 = vrot.slane %v1123, %v1130
        %v1133 = vunpack.c.l.s4 1983009808
        %v1134 = vunpack.c.0.s8 %v1133
        %v1135 = vlaneseq
        %v1136 = vshrl.u32 %v1135, 7
        %v1137 = vsub.s32 %v1134, %v1136
        %v1138 = vrot.slane %v1124, %v1137
        %v1139 = vcombine.low %v1114, %v1118
        %v1140 = vcombine.high %v1114, %v1118
        %v1142 = vunpack.c.l.s4 1983009808
        %v1143 = vunpack.c.0.s8 %v1142
        %v1144 = vlaneseq
        %v1145 = vshrl.u32 %v1144, 7
        %v1146 = vsub.s32 %v1143, %v1145
        %v1147 = vrot.slane %v1139, %v1146
        %v1149 = vunpack.c.l.s4 1983009808
        %v1150 = vunpack.c.0.s8 %v1149
        %v1151 = vlaneseq
        %v1152 = vshrl.u32 %v1151, 7
        %v1153 = vsub.s32 %v1150, %v1152
        %v1154 = vrot.slane %v1140, %v1153
        %v1155 = vcombine.low %v1131, %v1147
        %v1156 = vcombine.high %v1131, %v1147
        %v1158 = vunpack.c.l.s4 1934713408
        %v1159 = vunpack.c.0.s8 %v1158
        %v1160 = vlaneseq
        %v1161 = vshrl.u32 %v1160, 7
        %v1162 = vsub.s32 %v1159, %v1161
        %v1163 = vrot.slane %v1155, %v1162
        %v1165 = vunpack.c.l.s4 1934713408
        %v1166 = vunpack.c.0.s8 %v1165
        %v1167 = vlaneseq
        %v1168 = vshrl.u32 %v1167, 7
        %v1169 = vsub.s32 %v1166, %v1168
        %v1170 = vrot.slane %v1156, %v1169
        %v1171 = vcombine.low %v1138, %v1154
        %v1172 = vcombine.high %v1138, %v1154
        %v1174 = vunpack.c.l.s4 1934713408
        %v1175 = vunpack.c.0.s8 %v1174
        %v1176 = vlaneseq
        %v1177 = vshrl.u32 %v1176, 7
        %v1178 = vsub.s32 %v1175, %v1177
        %v1179 = vrot.slane %v1171, %v1178
        %v1181 = vunpack.c.l.s4 1934713408
        %v1182 = vunpack.c.0.s8 %v1181
        %v1183 = vlaneseq
        %v1184 = vshrl.u32 %v1183, 7
        %v1185 = vsub.s32 %v1182, %v1184
        %v1186 = vrot.slane %v1172, %v1185
        %v1187 = vcombine.high %v1163, 0.0
        %v1188 = vcombine.high %v1170, 0.0
        %v1189 = vcombine.high %v1179, 0.0
        %v1190 = vcombine.high %v1186, 0.0
        %v1191 = vcombine.low %v1163, %v1170
        %v1193 = vunpack.c.l.s4 1983009808
        %v1194 = vunpack.c.0.s8 %v1193
        %v1195 = vlaneseq
        %v1196 = vshrl.u32 %v1195, 7
        %v1197 = vsub.s32 %v1194, %v1196
        %v1198 = vrot.slane %v1191, %v1197
        %v1199 = vcombine.low %v1187, %v1188
        %v1201 = vunpack.c.l.s4 1983009808
        %v1202 = vunpack.c.0.s8 %v1201
        %v1203 = vlaneseq
        %v1204 = vshrl.u32 %v1203, 7
        %v1205 = vsub.s32 %v1202, %v1204
        %v1206 = vrot.slane %v1199, %v1205
        %v1207 = vcombine.low %v1179, %v1186
        %v1209 = vunpack.c.l.s4 1983009808
        %v1210 = vunpack.c.0.s8 %v1209
        %v1211 = vlaneseq
        %v1212 = vshrl.u32 %v1211, 7
        %v1213 = vsub.s32 %v1210, %v1212
        %v1214 = vrot.slane %v1207, %v1213
        %v1215 = vcombine.low %v1189, %v1190
        %v1217 = vunpack.c.l.s4 1983009808
        %v1218 = vunpack.c.0.s8 %v1217
        %v1219 = vlaneseq
        %v1220 = vshrl.u32 %v1219, 7
        %v1221 = vsub.s32 %v1218, %v1220
        %v1222 = vrot.slane %v1215, %v1221
        %v1223 = vcombine.low %v1198, %v1206
        %v1224 = vcombine.high %v1198, %v1206
        %v1226 = vunpack.c.l.s4 1934713408
        %v1227 = vunpack.c.0.s8 %v1226
        %v1228 = vlaneseq
        %v1229 = vshrl.u32 %v1228, 7
        %v1230 = vsub.s32 %v1227, %v1229
        %v1231 = vrot.slane %v1223, %v1230
        %v1233 = vunpack.c.l.s4 1934713408
        %v1234 = vunpack.c.0.s8 %v1233
        %v1235 = vlaneseq
        %v1236 = vshrl.u32 %v1235, 7
        %v1237 = vsub.s32 %v1234, %v1236
        %v1238 = vrot.slane %v1224, %v1237
        %v1239 = vcombine.low %v1214, %v1222
        %v1240 = vcombine.high %v1214, %v1222
        %v1242 = vunpack.c.l.s4 1934713408
        %v1243 = vunpack.c.0.s8 %v1242
        %v1244 = vlaneseq
        %v1245 = vshrl.u32 %v1244, 7
        %v1246 = vsub.s32 %v1243, %v1245
        %v1247 = vrot.slane %v1239, %v1246
        %v1249 = vunpack.c.l.s4 1934713408
        %v1250 = vunpack.c.0.s8 %v1249
        %v1251 = vlaneseq
        %v1252 = vshrl.u32 %v1251, 7
        %v1253 = vsub.s32 %v1250, %v1252
        %v1254 = vrot.slane %v1240, %v1253
        %v1255 = vcombine.low %v1231, %v1247
        %v1256 = vcombine.high %v1231, %v1247
        %v1257 = vcombine.low %v1238, %v1254
        %v1258 = vcombine.high %v1238, %v1254
        %v1259 = vld [vmem:[%s586] sm:$0xff]
        %vm1260 = vcmask 64512
        %v1262 = vsel %vm1260, %v959, 0
        %v1265 = vsel %vm1260, %v1107, 0
        %1267 = vmatprep.subr.mxu0 0.0
        %1268 = vmatpush1.xpose.msra.mxu0 0.0
        %1269 = vmatprep.subr.mxu0 0.0
        %1270 = vmatpush1.xpose.msra.mxu0 0.0
        %1271 = vmatprep.subr.mxu0 0.0
        %1272 = vmatpush1.xpose.msra.mxu0 0.0
        %1273 = vmatprep.subr.mxu0 0.0
        %1274 = vmatpush1.xpose.msra.mxu0 0.0
        %1275 = vmatprep.subr.mxu0 0.0
        %1276 = vmatpush1.xpose.msra.mxu0 0.0
        %1277 = vmatprep.subr.mxu0 0.0
        %1278 = vmatpush1.xpose.msra.mxu0 0.0
        %1279 = vmatprep.subr.mxu0 0.0
        %1280 = vmatpush1.xpose.msra.mxu0 0.0
        %1281 = vmatprep.subr.mxu0 0.0
        %1282 = vmatpush1.xpose.msra.mxu0 0.0
        %1283 = vmatprep.subr.mxu0 0.0
        %1284 = vmatpush1.xpose.msra.mxu0 0.0
        %1285 = vmatprep.subr.mxu0 0.0
        %1286 = vmatpush1.xpose.msra.mxu0 0.0
        %1287 = vmatprep.subr.mxu0 0.0
        %1288 = vmatpush1.xpose.msra.mxu0 0.0
        %1289 = vmatprep.subr.mxu0 0.0
        %1290 = vmatpush1.xpose.msra.mxu0 0.0
        %1291 = vmatprep.subr.mxu0 0.0
        %1292 = vmatpush1.xpose.msra.mxu0 0.0
        %1293 = vmatprep.subr.mxu0 0.0
        %1294 = vmatpush1.xpose.msra.mxu0 0.0
        %1295 = vmatprep.subr.mxu0 0.0
        %1296 = vmatpush1.xpose.msra.mxu0 0.0
        %1297 = vmatprep.subr.mxu0 0.0
        %1298 = vmatpush1.xpose.msra.mxu0 %v1265
        %1299 = vmatprep.subr.mxu0 0.0
        %1300 = vmatpush2.xpose.msra.mxu0 0.0
        %1301 = vmatprep.subr.mxu0 0.0
        %1302 = vmatpush2.xpose.msra.mxu0 0.0
        %1303 = vmatprep.subr.mxu0 0.0
        %1304 = vmatpush2.xpose.msra.mxu0 0.0
        %1305 = vmatprep.subr.mxu0 0.0
        %1306 = vmatpush2.xpose.msra.mxu0 0.0
        %1307 = vmatprep.subr.mxu0 0.0
        %1308 = vmatpush2.xpose.msra.mxu0 0.0
        %1309 = vmatprep.subr.mxu0 0.0
        %1310 = vmatpush2.xpose.msra.mxu0 0.0
        %1311 = vmatprep.subr.mxu0 0.0
        %1312 = vmatpush2.xpose.msra.mxu0 0.0
        %1313 = vmatprep.subr.mxu0 0.0
        %1314 = vmatpush2.xpose.msra.mxu0 0.0
        %1315 = vmatprep.subr.mxu0 0.0
        %1316 = vmatpush2.xpose.msra.mxu0 0.0
        %1317 = vmatprep.subr.mxu0 0.0
        %1318 = vmatpush2.xpose.msra.mxu0 0.0
        %1319 = vmatprep.subr.mxu0 0.0
        %1320 = vmatpush2.xpose.msra.mxu0 0.0
        %1321 = vmatprep.subr.mxu0 0.0
        %1322 = vmatpush2.xpose.msra.mxu0 0.0
        %1323 = vmatprep.subr.mxu0 0.0
        %1324 = vmatpush2.xpose.msra.mxu0 0.0
        %1325 = vmatprep.subr.mxu0 0.0
        %1326 = vmatpush2.xpose.msra.mxu0 0.0
        %1327 = vmatprep.subr.mxu0 0.0
        %1328 = vmatpush2.xpose.msra.mxu0 0.0
        %1329 = vmatprep.subr.mxu0 0.0
        %1330 = vmatpush2.xpose.msra.mxu0 0.0
        %1331 = vmatprep.mubr.f32.mxu0 0.0
        %1332 = vmatmul.mubr.f32.gmra.mxu0 %v1262
        %v1333 = vpop.f32.mrf.mxu0
        %v1334 = vadd.f32 %v1259, %v1333
        %v1335 = vpop.f32.mrf.mxu0
        %1336 = vdwg.mxu0
        %v1338 = vsel %vm1260, %v960, 0
        %v1341 = vsel %vm1260, %v1108, 0
        %1343 = vmatprep.subr.mxu0 0.0
        %1344 = vmatpush1.xpose.msra.mxu0 0.0
        %1345 = vmatprep.subr.mxu0 0.0
        %1346 = vmatpush1.xpose.msra.mxu0 0.0
        %1347 = vmatprep.subr.mxu0 0.0
        %1348 = vmatpush1.xpose.msra.mxu0 0.0
        %1349 = vmatprep.subr.mxu0 0.0
        %1350 = vmatpush1.xpose.msra.mxu0 0.0
        %1351 = vmatprep.subr.mxu0 0.0
        %1352 = vmatpush1.xpose.msra.mxu0 0.0
        %1353 = vmatprep.subr.mxu0 0.0
        %1354 = vmatpush1.xpose.msra.mxu0 0.0
        %1355 = vmatprep.subr.mxu0 0.0
        %1356 = vmatpush1.xpose.msra.mxu0 0.0
        %1357 = vmatprep.subr.mxu0 0.0
        %1358 = vmatpush1.xpose.msra.mxu0 0.0
        %1359 = vmatprep.subr.mxu0 0.0
        %1360 = vmatpush1.xpose.msra.mxu0 0.0
        %1361 = vmatprep.subr.mxu0 0.0
        %1362 = vmatpush1.xpose.msra.mxu0 0.0
        %1363 = vmatprep.subr.mxu0 0.0
        %1364 = vmatpush1.xpose.msra.mxu0 0.0
        %1365 = vmatprep.subr.mxu0 0.0
        %1366 = vmatpush1.xpose.msra.mxu0 0.0
        %1367 = vmatprep.subr.mxu0 0.0
        %1368 = vmatpush1.xpose.msra.mxu0 0.0
        %1369 = vmatprep.subr.mxu0 0.0
        %1370 = vmatpush1.xpose.msra.mxu0 0.0
        %1371 = vmatprep.subr.mxu0 0.0
        %1372 = vmatpush1.xpose.msra.mxu0 0.0
        %1373 = vmatprep.subr.mxu0 0.0
        %1374 = vmatpush1.xpose.msra.mxu0 %v1341
        %1375 = vmatprep.subr.mxu0 0.0
        %1376 = vmatpush2.xpose.msra.mxu0 0.0
        %1377 = vmatprep.subr.mxu0 0.0
        %1378 = vmatpush2.xpose.msra.mxu0 0.0
        %1379 = vmatprep.subr.mxu0 0.0
        %1380 = vmatpush2.xpose.msra.mxu0 0.0
        %1381 = vmatprep.subr.mxu0 0.0
        %1382 = vmatpush2.xpose.msra.mxu0 0.0
        %1383 = vmatprep.subr.mxu0 0.0
        %1384 = vmatpush2.xpose.msra.mxu0 0.0
        %1385 = vmatprep.subr.mxu0 0.0
        %1386 = vmatpush2.xpose.msra.mxu0 0.0
        %1387 = vmatprep.subr.mxu0 0.0
        %1388 = vmatpush2.xpose.msra.mxu0 0.0
        %1389 = vmatprep.subr.mxu0 0.0
        %1390 = vmatpush2.xpose.msra.mxu0 0.0
        %1391 = vmatprep.subr.mxu0 0.0
        %1392 = vmatpush2.xpose.msra.mxu0 0.0
        %1393 = vmatprep.subr.mxu0 0.0
        %1394 = vmatpush2.xpose.msra.mxu0 0.0
        %1395 = vmatprep.subr.mxu0 0.0
        %1396 = vmatpush2.xpose.msra.mxu0 0.0
        %1397 = vmatprep.subr.mxu0 0.0
        %1398 = vmatpush2.xpose.msra.mxu0 0.0
        %1399 = vmatprep.subr.mxu0 0.0
        %1400 = vmatpush2.xpose.msra.mxu0 0.0
        %1401 = vmatprep.subr.mxu0 0.0
        %1402 = vmatpush2.xpose.msra.mxu0 0.0
        %1403 = vmatprep.subr.mxu0 0.0
        %1404 = vmatpush2.xpose.msra.mxu0 0.0
        %1405 = vmatprep.subr.mxu0 0.0
        %1406 = vmatpush2.xpose.msra.mxu0 0.0
        %1407 = vmatprep.mubr.f32.mxu0 0.0
        %1408 = vmatmul.mubr.f32.gmra.mxu0 %v1338
        %v1409 = vpop.f32.mrf.mxu0
        %v1410 = vadd.f32 %v1259, %v1409
        %v1411 = vpop.f32.mrf.mxu0
        %1412 = vdwg.mxu0
        %v1414 = vsel %vm1260, %v961, 0
        %v1417 = vsel %vm1260, %v1109, 0
        %1419 = vmatprep.subr.mxu0 0.0
        %1420 = vmatpush1.xpose.msra.mxu0 0.0
        %1421 = vmatprep.subr.mxu0 0.0
        %1422 = vmatpush1.xpose.msra.mxu0 0.0
        %1423 = vmatprep.subr.mxu0 0.0
        %1424 = vmatpush1.xpose.msra.mxu0 0.0
        %1425 = vmatprep.subr.mxu0 0.0
        %1426 = vmatpush1.xpose.msra.mxu0 0.0
        %1427 = vmatprep.subr.mxu0 0.0
        %1428 = vmatpush1.xpose.msra.mxu0 0.0
        %1429 = vmatprep.subr.mxu0 0.0
        %1430 = vmatpush1.xpose.msra.mxu0 0.0
        %1431 = vmatprep.subr.mxu0 0.0
        %1432 = vmatpush1.xpose.msra.mxu0 0.0
        %1433 = vmatprep.subr.mxu0 0.0
        %1434 = vmatpush1.xpose.msra.mxu0 0.0
        %1435 = vmatprep.subr.mxu0 0.0
        %1436 = vmatpush1.xpose.msra.mxu0 0.0
        %1437 = vmatprep.subr.mxu0 0.0
        %1438 = vmatpush1.xpose.msra.mxu0 0.0
        %1439 = vmatprep.subr.mxu0 0.0
        %1440 = vmatpush1.xpose.msra.mxu0 0.0
        %1441 = vmatprep.subr.mxu0 0.0
        %1442 = vmatpush1.xpose.msra.mxu0 0.0
        %1443 = vmatprep.subr.mxu0 0.0
        %1444 = vmatpush1.xpose.msra.mxu0 0.0
        %1445 = vmatprep.subr.mxu0 0.0
        %1446 = vmatpush1.xpose.msra.mxu0 0.0
        %1447 = vmatprep.subr.mxu0 0.0
        %1448 = vmatpush1.xpose.msra.mxu0 0.0
        %1449 = vmatprep.subr.mxu0 0.0
        %1450 = vmatpush1.xpose.msra.mxu0 %v1417
        %1451 = vmatprep.subr.mxu0 0.0
        %1452 = vmatpush2.xpose.msra.mxu0 0.0
        %1453 = vmatprep.subr.mxu0 0.0
        %1454 = vmatpush2.xpose.msra.mxu0 0.0
        %1455 = vmatprep.subr.mxu0 0.0
        %1456 = vmatpush2.xpose.msra.mxu0 0.0
        %1457 = vmatprep.subr.mxu0 0.0
        %1458 = vmatpush2.xpose.msra.mxu0 0.0
        %1459 = vmatprep.subr.mxu0 0.0
        %1460 = vmatpush2.xpose.msra.mxu0 0.0
        %1461 = vmatprep.subr.mxu0 0.0
        %1462 = vmatpush2.xpose.msra.mxu0 0.0
        %1463 = vmatprep.subr.mxu0 0.0
        %1464 = vmatpush2.xpose.msra.mxu0 0.0
        %1465 = vmatprep.subr.mxu0 0.0
        %1466 = vmatpush2.xpose.msra.mxu0 0.0
        %1467 = vmatprep.subr.mxu0 0.0
        %1468 = vmatpush2.xpose.msra.mxu0 0.0
        %1469 = vmatprep.subr.mxu0 0.0
        %1470 = vmatpush2.xpose.msra.mxu0 0.0
        %1471 = vmatprep.subr.mxu0 0.0
        %1472 = vmatpush2.xpose.msra.mxu0 0.0
        %1473 = vmatprep.subr.mxu0 0.0
        %1474 = vmatpush2.xpose.msra.mxu0 0.0
        %1475 = vmatprep.subr.mxu0 0.0
        %1476 = vmatpush2.xpose.msra.mxu0 0.0
        %1477 = vmatprep.subr.mxu0 0.0
        %1478 = vmatpush2.xpose.msra.mxu0 0.0
        %1479 = vmatprep.subr.mxu0 0.0
        %1480 = vmatpush2.xpose.msra.mxu0 0.0
        %1481 = vmatprep.subr.mxu0 0.0
        %1482 = vmatpush2.xpose.msra.mxu0 0.0
        %1483 = vmatprep.mubr.f32.mxu0 0.0
        %1484 = vmatmul.mubr.f32.gmra.mxu0 %v1414
        %v1485 = vpop.f32.mrf.mxu0
        %v1486 = vadd.f32 %v1259, %v1485
        %v1487 = vpop.f32.mrf.mxu0
        %1488 = vdwg.mxu0
        %v1490 = vsel %vm1260, %v962, 0
        %v1493 = vsel %vm1260, %v1110, 0
        %1495 = vmatprep.subr.mxu0 0.0
        %1496 = vmatpush1.xpose.msra.mxu0 0.0
        %1497 = vmatprep.subr.mxu0 0.0
        %1498 = vmatpush1.xpose.msra.mxu0 0.0
        %1499 = vmatprep.subr.mxu0 0.0
        %1500 = vmatpush1.xpose.msra.mxu0 0.0
        %1501 = vmatprep.subr.mxu0 0.0
        %1502 = vmatpush1.xpose.msra.mxu0 0.0
        %1503 = vmatprep.subr.mxu0 0.0
        %1504 = vmatpush1.xpose.msra.mxu0 0.0
        %1505 = vmatprep.subr.mxu0 0.0
        %1506 = vmatpush1.xpose.msra.mxu0 0.0
        %1507 = vmatprep.subr.mxu0 0.0
        %1508 = vmatpush1.xpose.msra.mxu0 0.0
        %1509 = vmatprep.subr.mxu0 0.0
        %1510 = vmatpush1.xpose.msra.mxu0 0.0
        %1511 = vmatprep.subr.mxu0 0.0
        %1512 = vmatpush1.xpose.msra.mxu0 0.0
        %1513 = vmatprep.subr.mxu0 0.0
        %1514 = vmatpush1.xpose.msra.mxu0 0.0
        %1515 = vmatprep.subr.mxu0 0.0
        %1516 = vmatpush1.xpose.msra.mxu0 0.0
        %1517 = vmatprep.subr.mxu0 0.0
        %1518 = vmatpush1.xpose.msra.mxu0 0.0
        %1519 = vmatprep.subr.mxu0 0.0
        %1520 = vmatpush1.xpose.msra.mxu0 0.0
        %1521 = vmatprep.subr.mxu0 0.0
        %1522 = vmatpush1.xpose.msra.mxu0 0.0
        %1523 = vmatprep.subr.mxu0 0.0
        %1524 = vmatpush1.xpose.msra.mxu0 0.0
        %1525 = vmatprep.subr.mxu0 0.0
        %1526 = vmatpush1.xpose.msra.mxu0 %v1493
        %1527 = vmatprep.subr.mxu0 0.0
        %1528 = vmatpush2.xpose.msra.mxu0 0.0
        %1529 = vmatprep.subr.mxu0 0.0
        %1530 = vmatpush2.xpose.msra.mxu0 0.0
        %1531 = vmatprep.subr.mxu0 0.0
        %1532 = vmatpush2.xpose.msra.mxu0 0.0
        %1533 = vmatprep.subr.mxu0 0.0
        %1534 = vmatpush2.xpose.msra.mxu0 0.0
        %1535 = vmatprep.subr.mxu0 0.0
        %1536 = vmatpush2.xpose.msra.mxu0 0.0
        %1537 = vmatprep.subr.mxu0 0.0
        %1538 = vmatpush2.xpose.msra.mxu0 0.0
        %1539 = vmatprep.subr.mxu0 0.0
        %1540 = vmatpush2.xpose.msra.mxu0 0.0
        %1541 = vmatprep.subr.mxu0 0.0
        %1542 = vmatpush2.xpose.msra.mxu0 0.0
        %1543 = vmatprep.subr.mxu0 0.0
        %1544 = vmatpush2.xpose.msra.mxu0 0.0
        %1545 = vmatprep.subr.mxu0 0.0
        %1546 = vmatpush2.xpose.msra.mxu0 0.0
        %1547 = vmatprep.subr.mxu0 0.0
        %1548 = vmatpush2.xpose.msra.mxu0 0.0
        %1549 = vmatprep.subr.mxu0 0.0
        %1550 = vmatpush2.xpose.msra.mxu0 0.0
        %1551 = vmatprep.subr.mxu0 0.0
        %1552 = vmatpush2.xpose.msra.mxu0 0.0
        %1553 = vmatprep.subr.mxu0 0.0
        %1554 = vmatpush2.xpose.msra.mxu0 0.0
        %1555 = vmatprep.subr.mxu0 0.0
        %1556 = vmatpush2.xpose.msra.mxu0 0.0
        %1557 = vmatprep.subr.mxu0 0.0
        %1558 = vmatpush2.xpose.msra.mxu0 0.0
        %1559 = vmatprep.mubr.f32.mxu0 0.0
        %1560 = vmatmul.mubr.f32.gmra.mxu0 %v1490
        %v1561 = vpop.f32.mrf.mxu0
        %v1562 = vadd.f32 %v1259, %v1561
        %v1563 = vpop.f32.mrf.mxu0
        %1564 = vdwg.mxu0
        %v1565 = vsel %vm1260, %v1334, -inf
        %1566 = vmax.xlane.f32.xlu0 %v1565
        %v1567 = vpop.xlane.xlu0 %1566
        %v1568 = vsel %vm1260, %v1410, -inf
        %1569 = vmax.xlane.f32.xlu0 %v1568
        %v1570 = vpop.xlane.xlu0 %1569
        %v1571 = vsel %vm1260, %v1486, -inf
        %1572 = vmax.xlane.f32.xlu0 %v1571
        %v1573 = vpop.xlane.xlu0 %1572
        %v1574 = vsel %vm1260, %v1562, -inf
        %1575 = vmax.xlane.f32.xlu0 %v1574
        %v1576 = vpop.xlane.xlu0 %1575
        %v1577 = vsub.f32 %v1334, %v1567
        %v1578 = vsub.f32 %v1410, %v1570
        %v1579 = vsub.f32 %v1486, %v1573
        %v1580 = vsub.f32 %v1562, %v1576
        %v1581 = vmul.f32 %v1577, 1.442695
        %v1582 = vpow.pop %v1581
        %v1583 = vmul.f32 %v1578, 1.442695
        %v1584 = vpow.pop %v1583
        %v1585 = vmul.f32 %v1579, 1.442695
        %v1586 = vpow.pop %v1585
        %v1587 = vmul.f32 %v1580, 1.442695
        %v1588 = vpow.pop %v1587
        %v1589 = vsel %vm1260, %v1582, 0.0
        %1590 = vadd.xlane.f32.xlu0 %v1589
        %v1591 = vpop.xlane.xlu0 %1590
        %v1592 = vsel %vm1260, %v1584, 0.0
        %1593 = vadd.xlane.f32.xlu0 %v1592
        %v1594 = vpop.xlane.xlu0 %1593
        %v1595 = vsel %vm1260, %v1586, 0.0
        %1596 = vadd.xlane.f32.xlu0 %v1595
        %v1597 = vpop.xlane.xlu0 %1596
        %v1598 = vsel %vm1260, %v1588, 0.0
        %1599 = vadd.xlane.f32.xlu0 %v1598
        %v1600 = vpop.xlane.xlu0 %1599
        %v1601 = vrcp.pop %v1591
        %v1602 = vmul.f32 %v1582, %v1601
        %v1603 = vrcp.pop %v1594
        %v1604 = vmul.f32 %v1584, %v1603
        %v1605 = vrcp.pop %v1597
        %v1606 = vmul.f32 %v1586, %v1605
        %v1607 = vrcp.pop %v1600
        %v1608 = vmul.f32 %v1588, %v1607
        %v1610 = vsel %vm1260, %v1602, 0
        %1612 = vmatprep.subr.mxu0 0.0
        %1613 = vmatpush1.msra.mxu0 0.0
        %1614 = vmatprep.subr.mxu0 0.0
        %1615 = vmatpush1.msra.mxu0 0.0
        %1616 = vmatprep.subr.mxu0 0.0
        %1617 = vmatpush1.msra.mxu0 0.0
        %1618 = vmatprep.subr.mxu0 0.0
        %1619 = vmatpush1.msra.mxu0 0.0
        %1620 = vmatprep.subr.mxu0 0.0
        %1621 = vmatpush1.msra.mxu0 0.0
        %1622 = vmatprep.subr.mxu0 0.0
        %1623 = vmatpush1.msra.mxu0 0.0
        %1624 = vmatprep.subr.mxu0 0.0
        %1625 = vmatpush1.msra.mxu0 0.0
        %1626 = vmatprep.subr.mxu0 0.0
        %1627 = vmatpush1.msra.mxu0 0.0
        %1628 = vmatprep.subr.mxu0 0.0
        %1629 = vmatpush1.msra.mxu0 0.0
        %1630 = vmatprep.subr.mxu0 0.0
        %1631 = vmatpush1.msra.mxu0 0.0
        %1632 = vmatprep.subr.mxu0 0.0
        %1633 = vmatpush1.msra.mxu0 0.0
        %1634 = vmatprep.subr.mxu0 0.0
        %1635 = vmatpush1.msra.mxu0 0.0
        %1636 = vmatprep.subr.mxu0 0.0
        %1637 = vmatpush1.msra.mxu0 0.0
        %1638 = vmatprep.subr.mxu0 0.0
        %1639 = vmatpush1.msra.mxu0 0.0
        %1640 = vmatprep.subr.mxu0 0.0
        %1641 = vmatpush1.msra.mxu0 0.0
        %1642 = vmatprep.subr.mxu0 0.0
        %1643 = vmatpush1.msra.mxu0 %v1255
        %1644 = vmatprep.subr.mxu0 0.0
        %1645 = vmatpush2.msra.mxu0 0.0
        %1646 = vmatprep.subr.mxu0 0.0
        %1647 = vmatpush2.msra.mxu0 0.0
        %1648 = vmatprep.subr.mxu0 0.0
        %1649 = vmatpush2.msra.mxu0 0.0
        %1650 = vmatprep.subr.mxu0 0.0
        %1651 = vmatpush2.msra.mxu0 0.0
        %1652 = vmatprep.subr.mxu0 0.0
        %1653 = vmatpush2.msra.mxu0 0.0
        %1654 = vmatprep.subr.mxu0 0.0
        %1655 = vmatpush2.msra.mxu0 0.0
        %1656 = vmatprep.subr.mxu0 0.0
        %1657 = vmatpush2.msra.mxu0 0.0
        %1658 = vmatprep.subr.mxu0 0.0
        %1659 = vmatpush2.msra.mxu0 0.0
        %1660 = vmatprep.subr.mxu0 0.0
        %1661 = vmatpush2.msra.mxu0 0.0
        %1662 = vmatprep.subr.mxu0 0.0
        %1663 = vmatpush2.msra.mxu0 0.0
        %1664 = vmatprep.subr.mxu0 0.0
        %1665 = vmatpush2.msra.mxu0 0.0
        %1666 = vmatprep.subr.mxu0 0.0
        %1667 = vmatpush2.msra.mxu0 0.0
        %1668 = vmatprep.subr.mxu0 0.0
        %1669 = vmatpush2.msra.mxu0 0.0
        %1670 = vmatprep.subr.mxu0 0.0
        %1671 = vmatpush2.msra.mxu0 0.0
        %1672 = vmatprep.subr.mxu0 0.0
        %1673 = vmatpush2.msra.mxu0 0.0
        %1674 = vmatprep.subr.mxu0 0.0
        %1675 = vmatpush2.msra.mxu0 0.0
        %1676 = vmatprep.mubr.f32.mxu0 0.0
        %1677 = vmatmul.mubr.f32.gmra.mxu0 %v1610
        %v1678 = vpop.f32.mrf.mxu0
        %v1679 = vadd.f32 0.0, %v1678
        %v1680 = vpop.f32.mrf.mxu0
        %1681 = vdwg.mxu0
        %v1683 = vsel %vm1260, %v1604, 0
        %1685 = vmatprep.subr.mxu0 0.0
        %1686 = vmatpush1.msra.mxu0 0.0
        %1687 = vmatprep.subr.mxu0 0.0
        %1688 = vmatpush1.msra.mxu0 0.0
        %1689 = vmatprep.subr.mxu0 0.0
        %1690 = vmatpush1.msra.mxu0 0.0
        %1691 = vmatprep.subr.mxu0 0.0
        %1692 = vmatpush1.msra.mxu0 0.0
        %1693 = vmatprep.subr.mxu0 0.0
        %1694 = vmatpush1.msra.mxu0 0.0
        %1695 = vmatprep.subr.mxu0 0.0
        %1696 = vmatpush1.msra.mxu0 0.0
        %1697 = vmatprep.subr.mxu0 0.0
        %1698 = vmatpush1.msra.mxu0 0.0
        %1699 = vmatprep.subr.mxu0 0.0
        %1700 = vmatpush1.msra.mxu0 0.0
        %1701 = vmatprep.subr.mxu0 0.0
        %1702 = vmatpush1.msra.mxu0 0.0
        %1703 = vmatprep.subr.mxu0 0.0
        %1704 = vmatpush1.msra.mxu0 0.0
        %1705 = vmatprep.subr.mxu0 0.0
        %1706 = vmatpush1.msra.mxu0 0.0
        %1707 = vmatprep.subr.mxu0 0.0
        %1708 = vmatpush1.msra.mxu0 0.0
        %1709 = vmatprep.subr.mxu0 0.0
        %1710 = vmatpush1.msra.mxu0 0.0
        %1711 = vmatprep.subr.mxu0 0.0
        %1712 = vmatpush1.msra.mxu0 0.0
        %1713 = vmatprep.subr.mxu0 0.0
        %1714 = vmatpush1.msra.mxu0 0.0
        %1715 = vmatprep.subr.mxu0 0.0
        %1716 = vmatpush1.msra.mxu0 %v1256
        %1717 = vmatprep.subr.mxu0 0.0
        %1718 = vmatpush2.msra.mxu0 0.0
        %1719 = vmatprep.subr.mxu0 0.0
        %1720 = vmatpush2.msra.mxu0 0.0
        %1721 = vmatprep.subr.mxu0 0.0
        %1722 = vmatpush2.msra.mxu0 0.0
        %1723 = vmatprep.subr.mxu0 0.0
        %1724 = vmatpush2.msra.mxu0 0.0
        %1725 = vmatprep.subr.mxu0 0.0
        %1726 = vmatpush2.msra.mxu0 0.0
        %1727 = vmatprep.subr.mxu0 0.0
        %1728 = vmatpush2.msra.mxu0 0.0
        %1729 = vmatprep.subr.mxu0 0.0
        %1730 = vmatpush2.msra.mxu0 0.0
        %1731 = vmatprep.subr.mxu0 0.0
        %1732 = vmatpush2.msra.mxu0 0.0
        %1733 = vmatprep.subr.mxu0 0.0
        %1734 = vmatpush2.msra.mxu0 0.0
        %1735 = vmatprep.subr.mxu0 0.0
        %1736 = vmatpush2.msra.mxu0 0.0
        %1737 = vmatprep.subr.mxu0 0.0
        %1738 = vmatpush2.msra.mxu0 0.0
        %1739 = vmatprep.subr.mxu0 0.0
        %1740 = vmatpush2.msra.mxu0 0.0
        %1741 = vmatprep.subr.mxu0 0.0
        %1742 = vmatpush2.msra.mxu0 0.0
        %1743 = vmatprep.subr.mxu0 0.0
        %1744 = vmatpush2.msra.mxu0 0.0
        %1745 = vmatprep.subr.mxu0 0.0
        %1746 = vmatpush2.msra.mxu0 0.0
        %1747 = vmatprep.subr.mxu0 0.0
        %1748 = vmatpush2.msra.mxu0 0.0
        %1749 = vmatprep.mubr.f32.mxu0 0.0
        %1750 = vmatmul.mubr.f32.gmra.mxu0 %v1683
        %v1751 = vpop.f32.mrf.mxu0
        %v1752 = vadd.f32 0.0, %v1751
        %v1753 = vpop.f32.mrf.mxu0
        %1754 = vdwg.mxu0
        %v1756 = vsel %vm1260, %v1606, 0
        %1758 = vmatprep.subr.mxu0 0.0
        %1759 = vmatpush1.msra.mxu0 0.0
        %1760 = vmatprep.subr.mxu0 0.0
        %1761 = vmatpush1.msra.mxu0 0.0
        %1762 = vmatprep.subr.mxu0 0.0
        %1763 = vmatpush1.msra.mxu0 0.0
        %1764 = vmatprep.subr.mxu0 0.0
        %1765 = vmatpush1.msra.mxu0 0.0
        %1766 = vmatprep.subr.mxu0 0.0
        %1767 = vmatpush1.msra.mxu0 0.0
        %1768 = vmatprep.subr.mxu0 0.0
        %1769 = vmatpush1.msra.mxu0 0.0
        %1770 = vmatprep.subr.mxu0 0.0
        %1771 = vmatpush1.msra.mxu0 0.0
        %1772 = vmatprep.subr.mxu0 0.0
        %1773 = vmatpush1.msra.mxu0 0.0
        %1774 = vmatprep.subr.mxu0 0.0
        %1775 = vmatpush1.msra.mxu0 0.0
        %1776 = vmatprep.subr.mxu0 0.0
        %1777 = vmatpush1.msra.mxu0 0.0
        %1778 = vmatprep.subr.mxu0 0.0
        %1779 = vmatpush1.msra.mxu0 0.0
        %1780 = vmatprep.subr.mxu0 0.0
        %1781 = vmatpush1.msra.mxu0 0.0
        %1782 = vmatprep.subr.mxu0 0.0
        %1783 = vmatpush1.msra.mxu0 0.0
        %1784 = vmatprep.subr.mxu0 0.0
        %1785 = vmatpush1.msra.mxu0 0.0
        %1786 = vmatprep.subr.mxu0 0.0
        %1787 = vmatpush1.msra.mxu0 0.0
        %1788 = vmatprep.subr.mxu0 0.0
        %1789 = vmatpush1.msra.mxu0 %v1257
        %1790 = vmatprep.subr.mxu0 0.0
        %1791 = vmatpush2.msra.mxu0 0.0
        %1792 = vmatprep.subr.mxu0 0.0
        %1793 = vmatpush2.msra.mxu0 0.0
        %1794 = vmatprep.subr.mxu0 0.0
        %1795 = vmatpush2.msra.mxu0 0.0
        %1796 = vmatprep.subr.mxu0 0.0
        %1797 = vmatpush2.msra.mxu0 0.0
        %1798 = vmatprep.subr.mxu0 0.0
        %1799 = vmatpush2.msra.mxu0 0.0
        %1800 = vmatprep.subr.mxu0 0.0
        %1801 = vmatpush2.msra.mxu0 0.0
        %1802 = vmatprep.subr.mxu0 0.0
        %1803 = vmatpush2.msra.mxu0 0.0
        %1804 = vmatprep.subr.mxu0 0.0
        %1805 = vmatpush2.msra.mxu0 0.0
        %1806 = vmatprep.subr.mxu0 0.0
        %1807 = vmatpush2.msra.mxu0 0.0
        %1808 = vmatprep.subr.mxu0 0.0
        %1809 = vmatpush2.msra.mxu0 0.0
        %1810 = vmatprep.subr.mxu0 0.0
        %1811 = vmatpush2.msra.mxu0 0.0
        %1812 = vmatprep.subr.mxu0 0.0
        %1813 = vmatpush2.msra.mxu0 0.0
        %1814 = vmatprep.subr.mxu0 0.0
        %1815 = vmatpush2.msra.mxu0 0.0
        %1816 = vmatprep.subr.mxu0 0.0
        %1817 = vmatpush2.msra.mxu0 0.0
        %1818 = vmatprep.subr.mxu0 0.0
        %1819 = vmatpush2.msra.mxu0 0.0
        %1820 = vmatprep.subr.mxu0 0.0
        %1821 = vmatpush2.msra.mxu0 0.0
        %1822 = vmatprep.mubr.f32.mxu0 0.0
        %1823 = vmatmul.mubr.f32.gmra.mxu0 %v1756
        %v1824 = vpop.f32.mrf.mxu0
        %v1825 = vadd.f32 0.0, %v1824
        %v1826 = vpop.f32.mrf.mxu0
        %1827 = vdwg.mxu0
        %v1829 = vsel %vm1260, %v1608, 0
        %1831 = vmatprep.subr.mxu0 0.0
        %1832 = vmatpush1.msra.mxu0 0.0
        %1833 = vmatprep.subr.mxu0 0.0
        %1834 = vmatpush1.msra.mxu0 0.0
        %1835 = vmatprep.subr.mxu0 0.0
        %1836 = vmatpush1.msra.mxu0 0.0
        %1837 = vmatprep.subr.mxu0 0.0
        %1838 = vmatpush1.msra.mxu0 0.0
        %1839 = vmatprep.subr.mxu0 0.0
        %1840 = vmatpush1.msra.mxu0 0.0
        %1841 = vmatprep.subr.mxu0 0.0
        %1842 = vmatpush1.msra.mxu0 0.0
        %1843 = vmatprep.subr.mxu0 0.0
        %1844 = vmatpush1.msra.mxu0 0.0
        %1845 = vmatprep.subr.mxu0 0.0
        %1846 = vmatpush1.msra.mxu0 0.0
        %1847 = vmatprep.subr.mxu0 0.0
        %1848 = vmatpush1.msra.mxu0 0.0
        %1849 = vmatprep.subr.mxu0 0.0
        %1850 = vmatpush1.msra.mxu0 0.0
        %1851 = vmatprep.subr.mxu0 0.0
        %1852 = vmatpush1.msra.mxu0 0.0
        %1853 = vmatprep.subr.mxu0 0.0
        %1854 = vmatpush1.msra.mxu0 0.0
        %1855 = vmatprep.subr.mxu0 0.0
        %1856 = vmatpush1.msra.mxu0 0.0
        %1857 = vmatprep.subr.mxu0 0.0
        %1858 = vmatpush1.msra.mxu0 0.0
        %1859 = vmatprep.subr.mxu0 0.0
        %1860 = vmatpush1.msra.mxu0 0.0
        %1861 = vmatprep.subr.mxu0 0.0
        %1862 = vmatpush1.msra.mxu0 %v1258
        %1863 = vmatprep.subr.mxu0 0.0
        %1864 = vmatpush2.msra.mxu0 0.0
        %1865 = vmatprep.subr.mxu0 0.0
        %1866 = vmatpush2.msra.mxu0 0.0
        %1867 = vmatprep.subr.mxu0 0.0
        %1868 = vmatpush2.msra.mxu0 0.0
        %1869 = vmatprep.subr.mxu0 0.0
        %1870 = vmatpush2.msra.mxu0 0.0
        %1871 = vmatprep.subr.mxu0 0.0
        %1872 = vmatpush2.msra.mxu0 0.0
        %1873 = vmatprep.subr.mxu0 0.0
        %1874 = vmatpush2.msra.mxu0 0.0
        %1875 = vmatprep.subr.mxu0 0.0
        %1876 = vmatpush2.msra.mxu0 0.0
        %1877 = vmatprep.subr.mxu0 0.0
        %1878 = vmatpush2.msra.mxu0 0.0
        %1879 = vmatprep.subr.mxu0 0.0
        %1880 = vmatpush2.msra.mxu0 0.0
        %1881 = vmatprep.subr.mxu0 0.0
        %1882 = vmatpush2.msra.mxu0 0.0
        %1883 = vmatprep.subr.mxu0 0.0
        %1884 = vmatpush2.msra.mxu0 0.0
        %1885 = vmatprep.subr.mxu0 0.0
        %1886 = vmatpush2.msra.mxu0 0.0
        %1887 = vmatprep.subr.mxu0 0.0
        %1888 = vmatpush2.msra.mxu0 0.0
        %1889 = vmatprep.subr.mxu0 0.0
        %1890 = vmatpush2.msra.mxu0 0.0
        %1891 = vmatprep.subr.mxu0 0.0
        %1892 = vmatpush2.msra.mxu0 0.0
        %1893 = vmatprep.subr.mxu0 0.0
        %1894 = vmatpush2.msra.mxu0 0.0
        %1895 = vmatprep.mubr.f32.mxu0 0.0
        %1896 = vmatmul.mubr.f32.gmra.mxu0 %v1829
        %v1897 = vpop.f32.mrf.mxu0
        %v1898 = vadd.f32 0.0, %v1897
        %v1899 = vpop.f32.mrf.mxu0
        %1900 = vdwg.mxu0
        %v1901 = vcombine.low %v1679, %v1825
        %v1902 = vcombine.high %v1679, %v1825
        %v1904 = vunpack.c.l.s4 1983009808
        %v1905 = vunpack.c.0.s8 %v1904
        %v1906 = vlaneseq
        %v1907 = vshrl.u32 %v1906, 7
        %v1908 = vsub.s32 %v1905, %v1907
        %v1909 = vrot.slane %v1901, %v1908
        %v1911 = vunpack.c.l.s4 1983009808
        %v1912 = vunpack.c.0.s8 %v1911
        %v1913 = vlaneseq
        %v1914 = vshrl.u32 %v1913, 7
        %v1915 = vsub.s32 %v1912, %v1914
        %v1916 = vrot.slane %v1902, %v1915
        %v1917 = vcombine.low %v1752, %v1898
        %v1918 = vcombine.high %v1752, %v1898
        %v1920 = vunpack.c.l.s4 1983009808
        %v1921 = vunpack.c.0.s8 %v1920
        %v1922 = vlaneseq
        %v1923 = vshrl.u32 %v1922, 7
        %v1924 = vsub.s32 %v1921, %v1923
        %v1925 = vrot.slane %v1917, %v1924
        %v1927 = vunpack.c.l.s4 1983009808
        %v1928 = vunpack.c.0.s8 %v1927
        %v1929 = vlaneseq
        %v1930 = vshrl.u32 %v1929, 7
        %v1931 = vsub.s32 %v1928, %v1930
        %v1932 = vrot.slane %v1918, %v1931
        %v1933 = vcombine.low %v1909, %v1925
        %v1934 = vcombine.high %v1909, %v1925
        %v1936 = vunpack.c.l.s4 1934713408
        %v1937 = vunpack.c.0.s8 %v1936
        %v1938 = vlaneseq
        %v1939 = vshrl.u32 %v1938, 7
        %v1940 = vsub.s32 %v1937, %v1939
        %v1941 = vrot.slane %v1933, %v1940
        %v1943 = vunpack.c.l.s4 1934713408
        %v1944 = vunpack.c.0.s8 %v1943
        %v1945 = vlaneseq
        %v1946 = vshrl.u32 %v1945, 7
        %v1947 = vsub.s32 %v1944, %v1946
        %v1948 = vrot.slane %v1934, %v1947
        %v1949 = vcombine.low %v1916, %v1932
        %v1950 = vcombine.high %v1916, %v1932
        %v1952 = vunpack.c.l.s4 1934713408
        %v1953 = vunpack.c.0.s8 %v1952
        %v1954 = vlaneseq
        %v1955 = vshrl.u32 %v1954, 7
        %v1956 = vsub.s32 %v1953, %v1955
        %v1957 = vrot.slane %v1949, %v1956
        %v1959 = vunpack.c.l.s4 1934713408
        %v1960 = vunpack.c.0.s8 %v1959
        %v1961 = vlaneseq
        %v1962 = vshrl.u32 %v1961, 7
        %v1963 = vsub.s32 %v1960, %v1962
        %v1964 = vrot.slane %v1950, %v1963
        %v1965 = vcombine.high %v1941, 0.0
        %v1966 = vcombine.high %v1948, 0.0
        %v1967 = vcombine.high %v1957, 0.0
        %v1968 = vcombine.high %v1964, 0.0
        %v1969 = vcombine.low %v1941, %v1948
        %v1971 = vunpack.c.l.s4 1983009808
        %v1972 = vunpack.c.0.s8 %v1971
        %v1973 = vlaneseq
        %v1974 = vshrl.u32 %v1973, 7
        %v1975 = vsub.s32 %v1972, %v1974
        %v1976 = vrot.slane %v1969, %v1975
        %v1977 = vcombine.low %v1965, %v1966
        %v1979 = vunpack.c.l.s4 1983009808
        %v1980 = vunpack.c.0.s8 %v1979
        %v1981 = vlaneseq
        %v1982 = vshrl.u32 %v1981, 7
        %v1983 = vsub.s32 %v1980, %v1982
        %v1984 = vrot.slane %v1977, %v1983
        %v1985 = vcombine.low %v1957, %v1964
        %v1987 = vunpack.c.l.s4 1983009808
        %v1988 = vunpack.c.0.s8 %v1987
        %v1989 = vlaneseq
        %v1990 = vshrl.u32 %v1989, 7
        %v1991 = vsub.s32 %v1988, %v1990
        %v1992 = vrot.slane %v1985, %v1991
        %v1993 = vcombine.low %v1967, %v1968
        %v1995 = vunpack.c.l.s4 1983009808
        %v1996 = vunpack.c.0.s8 %v1995
        %v1997 = vlaneseq
        %v1998 = vshrl.u32 %v1997, 7
        %v1999 = vsub.s32 %v1996, %v1998
        %v2000 = vrot.slane %v1993, %v1999
        %v2001 = vcombine.low %v1976, %v1984
        %v2002 = vcombine.high %v1976, %v1984
        %v2004 = vunpack.c.l.s4 1934713408
        %v2005 = vunpack.c.0.s8 %v2004
        %v2006 = vlaneseq
        %v2007 = vshrl.u32 %v2006, 7
        %v2008 = vsub.s32 %v2005, %v2007
        %v2009 = vrot.slane %v2001, %v2008
        %v2011 = vunpack.c.l.s4 1934713408
        %v2012 = vunpack.c.0.s8 %v2011
        %v2013 = vlaneseq
        %v2014 = vshrl.u32 %v2013, 7
        %v2015 = vsub.s32 %v2012, %v2014
        %v2016 = vrot.slane %v2002, %v2015
        %v2017 = vcombine.low %v1992, %v2000
        %v2018 = vcombine.high %v1992, %v2000
        %v2020 = vunpack.c.l.s4 1934713408
        %v2021 = vunpack.c.0.s8 %v2020
        %v2022 = vlaneseq
        %v2023 = vshrl.u32 %v2022, 7
        %v2024 = vsub.s32 %v2021, %v2023
        %v2025 = vrot.slane %v2017, %v2024
        %v2027 = vunpack.c.l.s4 1934713408
        %v2028 = vunpack.c.0.s8 %v2027
        %v2029 = vlaneseq
        %v2030 = vshrl.u32 %v2029, 7
        %v2031 = vsub.s32 %v2028, %v2030
        %v2032 = vrot.slane %v2018, %v2031
        %v2033 = vcombine.low %v2009, %v2025
        %v2034 = vcombine.high %v2009, %v2025
        %v2035 = vcombine.low %v2016, %v2032
        %v2036 = vcombine.high %v2016, %v2032
        %2038 = vrot.lane.b32.xlu0 %v2034, 8
        %v2039 = vpop.permute.xlu0 %2038
        %2042 = vrot.lane.b32.xlu0 %v2035, 16
        %v2043 = vpop.permute.xlu0 %2042
        %2046 = vrot.lane.b32.xlu0 %v2036, 24
        %v2047 = vpop.permute.xlu0 %2046
        %v2049 = vsel %vm1260, %v2033, %v2039
        %vm2050 = vcmask 130048
        %v2051 = vsel %vm2050, %v2049, %v2043
        %vm2052 = vcmask 195584
        %v2053 = vsel %vm2052, %v2051, %v2047
        %v2054 = vld [vmem:[%s692] sm:$0xff]
        %v2055 = vld [vmem:[%s692 + $0x8] sm:$0xff]
        %v2056 = vld [vmem:[%s692 + $0x10] sm:$0xff]
        %v2057 = vld [vmem:[%s692 + $0x18] sm:$0xff]
        %v2058 = vld [vmem:[%s695] sm:$0x1]
        %v2060 = vlaneseq
        %v2061 = vshrl.u32 %v2060, 7
        %v2062 = vsub.s32 0, %v2061
        %v2063 = vrot.slane %v2058, %v2062
        %v2066 = vsel %vm743, %v2053, 0
        %2068 = vmatprep.subr.mxu0 0.0
        %2069 = vmatpush1.msra.mxu0 0.0
        %2070 = vmatprep.subr.mxu0 0.0
        %2071 = vmatpush1.msra.mxu0 0.0
        %2072 = vmatprep.subr.mxu0 0.0
        %2073 = vmatpush1.msra.mxu0 0.0
        %2074 = vmatprep.subr.mxu0 0.0
        %2075 = vmatpush1.msra.mxu0 0.0
        %2076 = vmatprep.subr.mxu0 0.0
        %2077 = vmatpush1.msra.mxu0 0.0
        %2078 = vmatprep.subr.mxu0 0.0
        %2079 = vmatpush1.msra.mxu0 0.0
        %2080 = vmatprep.subr.mxu0 0.0
        %2081 = vmatpush1.msra.mxu0 0.0
        %2082 = vmatprep.subr.mxu0 0.0
        %2083 = vmatpush1.msra.mxu0 0.0
        %2084 = vmatprep.subr.mxu0 0.0
        %2085 = vmatpush1.msra.mxu0 0.0
        %2086 = vmatprep.subr.mxu0 0.0
        %2087 = vmatpush1.msra.mxu0 0.0
        %2088 = vmatprep.subr.mxu0 0.0
        %2089 = vmatpush1.msra.mxu0 0.0
        %2090 = vmatprep.subr.mxu0 0.0
        %2091 = vmatpush1.msra.mxu0 0.0
        %2092 = vmatprep.subr.mxu0 0.0
        %2093 = vmatpush1.msra.mxu0 %v2057
        %2094 = vmatprep.subr.mxu0 0.0
        %2095 = vmatpush1.msra.mxu0 %v2056
        %2096 = vmatprep.subr.mxu0 0.0
        %2097 = vmatpush1.msra.mxu0 %v2055
        %2098 = vmatprep.subr.mxu0 0.0
        %2099 = vmatpush1.msra.mxu0 %v2054
        %2100 = vmatprep.subr.mxu0 0.0
        %2101 = vmatpush2.msra.mxu0 0.0
        %2102 = vmatprep.subr.mxu0 0.0
        %2103 = vmatpush2.msra.mxu0 0.0
        %2104 = vmatprep.subr.mxu0 0.0
        %2105 = vmatpush2.msra.mxu0 0.0
        %2106 = vmatprep.subr.mxu0 0.0
        %2107 = vmatpush2.msra.mxu0 0.0
        %2108 = vmatprep.subr.mxu0 0.0
        %2109 = vmatpush2.msra.mxu0 0.0
        %2110 = vmatprep.subr.mxu0 0.0
        %2111 = vmatpush2.msra.mxu0 0.0
        %2112 = vmatprep.subr.mxu0 0.0
        %2113 = vmatpush2.msra.mxu0 0.0
        %2114 = vmatprep.subr.mxu0 0.0
        %2115 = vmatpush2.msra.mxu0 0.0
        %2116 = vmatprep.subr.mxu0 0.0
        %2117 = vmatpush2.msra.mxu0 0.0
        %2118 = vmatprep.subr.mxu0 0.0
        %2119 = vmatpush2.msra.mxu0 0.0
        %2120 = vmatprep.subr.mxu0 0.0
        %2121 = vmatpush2.msra.mxu0 0.0
        %2122 = vmatprep.subr.mxu0 0.0
        %2123 = vmatpush2.msra.mxu0 0.0
        %2124 = vmatprep.subr.mxu0 0.0
        %2125 = vmatpush2.msra.mxu0 0.0
        %2126 = vmatprep.subr.mxu0 0.0
        %2127 = vmatpush2.msra.mxu0 0.0
        %2128 = vmatprep.subr.mxu0 0.0
        %2129 = vmatpush2.msra.mxu0 0.0
        %2130 = vmatprep.subr.mxu0 0.0
        %2131 = vmatpush2.msra.mxu0 0.0
        %2132 = vmatprep.mubr.f32.mxu0 0.0
        %2133 = vmatmul.mubr.f32.gmra.mxu0 %v2066
        %v2134 = vpop.f32.mrf.mxu0
        %v2135 = vadd.f32 %v2063, %v2134
        %v2136 = vpop.f32.mrf.mxu0
        %2137 = vdwg.mxu0
        %v2138 = vadd.f32 %v2135, %v731
        %v2139 = vld [vmem:[%s698] sm:$0x1]
        %v2140 = vld [vmem:[%s701] sm:$0x1]
        %v2141 = vsel %vm743, %v2138, 0.0
        %2142 = vadd.xlane.f32.xlu0 %v2141
        %v2143 = vpop.xlane.xlu0 %2142
        %v2144 = vrcp.pop 32.0
        %v2145 = vmul.f32 %v2143, %v2144
        %v2146 = vsub.f32 %v2138, %v2145
        %v2147 = vmul.f32 %v2146, %v2146
        %v2148 = vsel %vm743, %v2147, 0.0
        %2149 = vadd.xlane.f32.xlu0 %v2148
        %v2150 = vpop.xlane.xlu0 %2149
        %v2151 = vmul.f32 %v2150, %v2144
        %v2152 = vadd.f32 %v2151, 1e-12
        %v2153 = vrsqrt.pop %v2152
        %v2154 = vmul.f32 %v2146, %v2153
        %v2156 = vlaneseq
        %v2157 = vshrl.u32 %v2156, 7
        %v2158 = vsub.s32 0, %v2157
        %v2159 = vrot.slane %v2139, %v2158
        %v2161 = vmul.f32 %v2154, %v2159
        %v2163 = vlaneseq
        %v2164 = vshrl.u32 %v2163, 7
        %v2165 = vsub.s32 0, %v2164
        %v2166 = vrot.slane %v2140, %v2165
        %v2168 = vadd.f32 %v2161, %v2166
        %v2169 = vld [vmem:[%s706] sm:$0xff]
        %v2170 = vld [vmem:[%s706 + $0x8] sm:$0xff]
        %v2171 = vld [vmem:[%s706 + $0x10] sm:$0xff]
        %v2172 = vld [vmem:[%s706 + $0x18] sm:$0xff]
        %v2173 = vld [vmem:[%s709] sm:$0x1]
        %v2175 = vlaneseq
        %v2176 = vshrl.u32 %v2175, 7
        %v2177 = vsub.s32 0, %v2176
        %v2178 = vrot.slane %v2173, %v2177
        %v2181 = vsel %vm743, %v2168, 0
        %2183 = vmatprep.subr.mxu0 0.0
        %2184 = vmatpush1.msra.mxu0 0.0
        %2185 = vmatprep.subr.mxu0 0.0
        %2186 = vmatpush1.msra.mxu0 0.0
        %2187 = vmatprep.subr.mxu0 0.0
        %2188 = vmatpush1.msra.mxu0 0.0
        %2189 = vmatprep.subr.mxu0 0.0
        %2190 = vmatpush1.msra.mxu0 0.0
        %2191 = vmatprep.subr.mxu0 0.0
        %2192 = vmatpush1.msra.mxu0 0.0
        %2193 = vmatprep.subr.mxu0 0.0
        %2194 = vmatpush1.msra.mxu0 0.0
        %2195 = vmatprep.subr.mxu0 0.0
        %2196 = vmatpush1.msra.mxu0 0.0
        %2197 = vmatprep.subr.mxu0 0.0
        %2198 = vmatpush1.msra.mxu0 0.0
        %2199 = vmatprep.subr.mxu0 0.0
        %2200 = vmatpush1.msra.mxu0 0.0
        %2201 = vmatprep.subr.mxu0 0.0
        %2202 = vmatpush1.msra.mxu0 0.0
        %2203 = vmatprep.subr.mxu0 0.0
        %2204 = vmatpush1.msra.mxu0 0.0
        %2205 = vmatprep.subr.mxu0 0.0
        %2206 = vmatpush1.msra.mxu0 0.0
        %2207 = vmatprep.subr.mxu0 0.0
        %2208 = vmatpush1.msra.mxu0 %v2172
        %2209 = vmatprep.subr.mxu0 0.0
        %2210 = vmatpush1.msra.mxu0 %v2171
        %2211 = vmatprep.subr.mxu0 0.0
        %2212 = vmatpush1.msra.mxu0 %v2170
        %2213 = vmatprep.subr.mxu0 0.0
        %2214 = vmatpush1.msra.mxu0 %v2169
        %2215 = vmatprep.subr.mxu0 0.0
        %2216 = vmatpush2.msra.mxu0 0.0
        %2217 = vmatprep.subr.mxu0 0.0
        %2218 = vmatpush2.msra.mxu0 0.0
        %2219 = vmatprep.subr.mxu0 0.0
        %2220 = vmatpush2.msra.mxu0 0.0
        %2221 = vmatprep.subr.mxu0 0.0
        %2222 = vmatpush2.msra.mxu0 0.0
        %2223 = vmatprep.subr.mxu0 0.0
        %2224 = vmatpush2.msra.mxu0 0.0
        %2225 = vmatprep.subr.mxu0 0.0
        %2226 = vmatpush2.msra.mxu0 0.0
        %2227 = vmatprep.subr.mxu0 0.0
        %2228 = vmatpush2.msra.mxu0 0.0
        %2229 = vmatprep.subr.mxu0 0.0
        %2230 = vmatpush2.msra.mxu0 0.0
        %2231 = vmatprep.subr.mxu0 0.0
        %2232 = vmatpush2.msra.mxu0 0.0
        %2233 = vmatprep.subr.mxu0 0.0
        %2234 = vmatpush2.msra.mxu0 0.0
        %2235 = vmatprep.subr.mxu0 0.0
        %2236 = vmatpush2.msra.mxu0 0.0
        %2237 = vmatprep.subr.mxu0 0.0
        %2238 = vmatpush2.msra.mxu0 0.0
        %2239 = vmatprep.subr.mxu0 0.0
        %2240 = vmatpush2.msra.mxu0 0.0
        %2241 = vmatprep.subr.mxu0 0.0
        %2242 = vmatpush2.msra.mxu0 0.0
        %2243 = vmatprep.subr.mxu0 0.0
        %2244 = vmatpush2.msra.mxu0 0.0
        %2245 = vmatprep.subr.mxu0 0.0
        %2246 = vmatpush2.msra.mxu0 0.0
        %2247 = vmatprep.mubr.f32.mxu0 0.0
        %2248 = vmatmul.mubr.f32.gmra.mxu0 %v2181
        %v2249 = vpop.f32.mrf.mxu0
        %v2250 = vadd.f32 %v2178, %v2249
        %v2251 = vpop.f32.mrf.mxu0
        %2252 = vdwg.mxu0
        %v2253 = vmul.f32 %v2250, 0.5
        %v2254 = vmul.f32 %v2250, 0.044715
        %v2255 = vmul.f32 %v2254, %v2250
        %v2256 = vmul.f32 %v2255, %v2250
        %v2257 = vadd.f32 %v2250, %v2256
        %v2258 = vmul.f32 %v2257, 0.7978846
        %v2259 = vtanh.pop %v2258
        %v2260 = vadd.f32 %v2259, 1.0
        %v2261 = vmul.f32 %v2253, %v2260
        %v2262 = vld [vmem:[%s714] sm:$0xff]
        %v2263 = vld [vmem:[%s714 + $0x8] sm:$0xff]
        %v2264 = vld [vmem:[%s714 + $0x10] sm:$0xff]
        %v2265 = vld [vmem:[%s714 + $0x18] sm:$0xff]
        %v2266 = vld [vmem:[%s714 + $0x20] sm:$0xff]
        %v2267 = vld [vmem:[%s714 + $0x28] sm:$0xff]
        %v2268 = vld [vmem:[%s714 + $0x30] sm:$0xff]
        %v2269 = vld [vmem:[%s714 + $0x38] sm:$0xff]
        %v2270 = vld [vmem:[%s717] sm:$0x1]
        %v2272 = vlaneseq
        %v2273 = vshrl.u32 %v2272, 7
        %v2274 = vsub.s32 0, %v2273
        %v2275 = vrot.slane %v2270, %v2274
        %vm2277 = vcmask 523264
        %v2279 = vsel %vm2277, %v2261, 0
        %2281 = vmatprep.subr.mxu0 0.0
        %2282 = vmatpush1.msra.mxu0 0.0
        %2283 = vmatprep.subr.mxu0 0.0
        %2284 = vmatpush1.msra.mxu0 0.0
        %2285 = vmatprep.subr.mxu0 0.0
        %2286 = vmatpush1.msra.mxu0 0.0
        %2287 = vmatprep.subr.mxu0 0.0
        %2288 = vmatpush1.msra.mxu0 0.0
        %2289 = vmatprep.subr.mxu0 0.0
        %2290 = vmatpush1.msra.mxu0 0.0
        %2291 = vmatprep.subr.mxu0 0.0
        %2292 = vmatpush1.msra.mxu0 0.0
        %2293 = vmatprep.subr.mxu0 0.0
        %2294 = vmatpush1.msra.mxu0 0.0
        %2295 = vmatprep.subr.mxu0 0.0
        %2296 = vmatpush1.msra.mxu0 0.0
        %2297 = vmatprep.subr.mxu0 0.0
        %2298 = vmatpush1.msra.mxu0 %v2269
        %2299 = vmatprep.subr.mxu0 0.0
        %2300 = vmatpush1.msra.mxu0 %v2268
        %2301 = vmatprep.subr.mxu0 0.0
        %2302 = vmatpush1.msra.mxu0 %v2267
        %2303 = vmatprep.subr.mxu0 0.0
        %2304 = vmatpush1.msra.mxu0 %v2266
        %2305 = vmatprep.subr.mxu0 0.0
        %2306 = vmatpush1.msra.mxu0 %v2265
        %2307 = vmatprep.subr.mxu0 0.0
        %2308 = vmatpush1.msra.mxu0 %v2264
        %2309 = vmatprep.subr.mxu0 0.0
        %2310 = vmatpush1.msra.mxu0 %v2263
        %2311 = vmatprep.subr.mxu0 0.0
        %2312 = vmatpush1.msra.mxu0 %v2262
        %2313 = vmatprep.subr.mxu0 0.0
        %2314 = vmatpush2.msra.mxu0 0.0
        %2315 = vmatprep.subr.mxu0 0.0
        %2316 = vmatpush2.msra.mxu0 0.0
        %2317 = vmatprep.subr.mxu0 0.0
        %2318 = vmatpush2.msra.mxu0 0.0
        %2319 = vmatprep.subr.mxu0 0.0
        %2320 = vmatpush2.msra.mxu0 0.0
        %2321 = vmatprep.subr.mxu0 0.0
        %2322 = vmatpush2.msra.mxu0 0.0
        %2323 = vmatprep.subr.mxu0 0.0
        %2324 = vmatpush2.msra.mxu0 0.0
        %2325 = vmatprep.subr.mxu0 0.0
        %2326 = vmatpush2.msra.mxu0 0.0
        %2327 = vmatprep.subr.mxu0 0.0
        %2328 = vmatpush2.msra.mxu0 0.0
        %2329 = vmatprep.subr.mxu0 0.0
        %2330 = vmatpush2.msra.mxu0 0.0
        %2331 = vmatprep.subr.mxu0 0.0
        %2332 = vmatpush2.msra.mxu0 0.0
        %2333 = vmatprep.subr.mxu0 0.0
        %2334 = vmatpush2.msra.mxu0 0.0
        %2335 = vmatprep.subr.mxu0 0.0
        %2336 = vmatpush2.msra.mxu0 0.0
        %2337 = vmatprep.subr.mxu0 0.0
        %2338 = vmatpush2.msra.mxu0 0.0
        %2339 = vmatprep.subr.mxu0 0.0
        %2340 = vmatpush2.msra.mxu0 0.0
        %2341 = vmatprep.subr.mxu0 0.0
        %2342 = vmatpush2.msra.mxu0 0.0
        %2343 = vmatprep.subr.mxu0 0.0
        %2344 = vmatpush2.msra.mxu0 0.0
        %2345 = vmatprep.mubr.f32.mxu0 0.0
        %2346 = vmatmul.mubr.f32.gmra.mxu0 %v2279
        %v2347 = vpop.f32.mrf.mxu0
        %v2348 = vadd.f32 %v2275, %v2347
        %v2349 = vpop.f32.mrf.mxu0
        %2350 = vdwg.mxu0
        %v2351 = vadd.f32 %v2348, %v2168
        %v2352 = vld [vmem:[%s720] sm:$0x1]
        %v2353 = vld [vmem:[%s723] sm:$0x1]
        %v2354 = vsel %vm743, %v2351, 0.0
        %2355 = vadd.xlane.f32.xlu0 %v2354
        %v2356 = vpop.xlane.xlu0 %2355
        %v2357 = vmul.f32 %v2356, %v2144
        %v2358 = vsub.f32 %v2351, %v2357
        %v2359 = vmul.f32 %v2358, %v2358
        %v2360 = vsel %vm743, %v2359, 0.0
        %2361 = vadd.xlane.f32.xlu0 %v2360
        %v2362 = vpop.xlane.xlu0 %2361
        %v2363 = vmul.f32 %v2362, %v2144
        %v2364 = vadd.f32 %v2363, 1e-12
        %v2365 = vrsqrt.pop %v2364
        %v2366 = vmul.f32 %v2358, %v2365
        %v2368 = vlaneseq
        %v2369 = vshrl.u32 %v2368, 7
        %v2370 = vsub.s32 0, %v2369
        %v2371 = vrot.slane %v2352, %v2370
        %v2373 = vmul.f32 %v2366, %v2371
        %v2375 = vlaneseq
        %v2376 = vshrl.u32 %v2375, 7
        %v2377 = vsub.s32 0, %v2376
        %v2378 = vrot.slane %v2353, %v2377
        %v2380 = vadd.f32 %v2373, %v2378
        %2381 = vst.msk [vmem:[%s679] sm:$0xff] %vm743, %v2380
        %s2382 = sand.u32 %s418, 1
        %s2383 = scalar_lea.sflag [#allocation4], %s2382
        %s2384 = sand.u32 %s418, 1
        %s2385 = smul.addr %s2384, 8
        %s2386 = scalar_lea.vmem [#allocation7], %s2385
        // Predicated region
        $region89: #{tpu_custom_call.1} parent=75 // pred_check
          %p2387 = pneg %p428
        $region90: #{tpu_custom_call.1} parent=75 // pred_check_branch
          %2389 = sbr.rel (%p2387) target = $region92
        $region91: #{tpu_custom_call.1} parent=75 // pred_region
          %s2391 = ssub.s32 128, 128
          %2392 = vsyncadd %s2383, %s2391
          %s2393 = smul.addr %s38, 128
          %s2394 = scalar_lea.hbm %s14, %s2393
          %s2396 = sshll.u32 %s2386, 4
          %s2397 = int_to_ptr.vmem [resolvable:$true] %s2396
          %2399 = dma.vmem_to_hbm [thread:$0]  %s2397, 128, %s2394, %s2383
        $region92: #{tpu_custom_call.1} parent=75 // pred_fallthru
          _
      $region76: #{tpu_custom_call.1} parent=5 // pred_fallthru
        _
      %p2400 = scmp.le.s32.totalorder 2, %s29
      // Predicated region
      $region93: #{tpu_custom_call.1} parent=5 // pred_check
        %p2401 = pneg %p2400
      $region94: #{tpu_custom_call.1} parent=5 // pred_check_branch
        %2403 = sbr.rel (%p2401) target = $region96
      $region95: #{tpu_custom_call.1} parent=5 // pred_region
        %s2404 = ssub.s32 %s29, 2
        // Predicated region
        $region97: #{tpu_custom_call.1} parent=95 // pred_check
          %p2405 = pneg %p434
        $region98: #{tpu_custom_call.1} parent=95 // pred_check_branch
          %2407 = sbr.rel (%p2405) target = $region100
        $region99: #{tpu_custom_call.1} parent=95 // pred_region
          %s2408 = sand.u32 %s419, 1
          %s2409 = scalar_lea.sflag [#allocation4], %s2408
          %s2410 = sand.u32 %s419, 1
          %s2411 = smul.addr %s2410, 8
          %s2412 = scalar_lea.vmem [#allocation7], %s2411
          %2413 = dma.done %s2409, 128
        $region100: #{tpu_custom_call.1} parent=95 // pred_fallthru
          _
      $region96: #{tpu_custom_call.1} parent=5 // pred_fallthru
        _
    $region6: #{tpu_custom_call.1} parent=1 // loop_footer
      %s33 = sadd.s32 1, %s29
    $region7: #{tpu_custom_call.1} parent=1 // loop_footer_branch
      %28 = sbr.rel target = $region3
    $region8: #{tpu_custom_call.1} parent=1 // loop_exit
      _
    %2414 = vsyncpa [#allocation3], 1
    %s2415 = scalar_lea.sflag [#allocation3], 1
    %2416 = vsyncpa %s2415, 1
    %2417 = vsyncpa [#allocation6], 1
    %s2418 = scalar_lea.sflag [#allocation6], 1
    %2419 = vsyncpa %s2418, 1
    %2420 = vsyncpa [#allocation4], 1
    %s2421 = scalar_lea.sflag [#allocation4], 1
    %2422 = vsyncpa %s2421, 1

</llo_original>
